<compile_context>
chip_gen: v7x
topology: tpu7x:2x2x1
jax: 0.10.0
libtpu: 0.0.40
codegen_flags: <defaults>
</compile_context>

<pallas_src>
import jax
import jax.numpy as jnp
from jax.experimental import pallas as pl
from jax.experimental.pallas import tpu as pltpu


HIDDEN = 500      # nn.Linear(h*w, 500) -> nn.Linear(500, 500) -> nn.Linear(500, outputs)
LANE = 128
SUBLANE = 8
MAX_TB = 256      # raise to 512 for multi-thousand replay batches; VMEM stays < 4 MiB


def _round_up(x, m):
    return (x + m - 1) // m * m


def _pick_tb(B):
    """Batch tile: tiny batches -> single step; otherwise >= 2 steps (v7x megacore)
    with the tile chosen to minimize zero-row padding (multiple of 16)."""
    if B <= 16:
        return _round_up(B, SUBLANE)
    n_steps = max(2, pl.cdiv(B, MAX_TB))
    return min(MAX_TB, _round_up(pl.cdiv(B, n_steps), 16))


def _mlp_kernel(x_ref, w1_ref, b1_ref, w2_ref, b2_ref, w3_ref, b3_ref, o_ref):
    # In-kernel bf16 cast of x (VPU has slack; saves a wrapper cast + HBM pass).
    x = x_ref[...].astype(jnp.bfloat16)

    h1 = jnp.dot(x, w1_ref[...], preferred_element_type=jnp.float32) + b1_ref[...]
    h1 = jnp.maximum(h1, 0.0).astype(jnp.bfloat16)

    h2 = jnp.dot(h1, w2_ref[...], preferred_element_type=jnp.float32) + b2_ref[...]
    h2 = jnp.maximum(h2, 0.0)                       # stay f32 for the final layer

    # Final layer in full f32 (cheap: h_p x out_p) for Q-value / argmax stability.
    y = jnp.dot(h2, w3_ref[...], preferred_element_type=jnp.float32) + b3_ref[...]
    o_ref[...] = y.astype(o_ref.dtype)


def prepare_params(params):
    """One-time padding + casting of the weights/biases.

    Call once per parameter update and reuse the result across forward calls so
    the per-call wrapper does no weight re-padding / re-casting (the dominant
    wrapper cost at this problem size).  Dims derived from the param shapes.
    """
    d_in, hidden = params["w1_t"].shape
    hidden3, outputs = params["w3_t"].shape
    assert params["w2_t"].shape == (hidden, hidden3), "inconsistent hidden widths"

    d_in_p = _round_up(d_in, LANE)
    h_p = _round_up(hidden, LANE)        # 500 -> 512
    out_p = _round_up(outputs, LANE)     # e.g. 8 -> 128

    def pad2(a, rows, cols, dtype):
        a = a.astype(jnp.float32)
        return jnp.pad(a, ((0, rows - a.shape[0]), (0, cols - a.shape[1]))).astype(dtype)

    return {
        # Layers 1-2: bf16 operands (MXU-native); layer 3 stays f32.
        "w1": pad2(params["w1_t"], d_in_p, h_p, jnp.bfloat16),
        "w2": pad2(params["w2_t"], h_p, h_p, jnp.bfloat16),
        "w3": pad2(params["w3_t"], h_p, out_p, jnp.float32),
        "b1": pad2(params["b1"].reshape(1, -1), 1, h_p, jnp.float32),
        "b2": pad2(params["b2"].reshape(1, -1), 1, h_p, jnp.float32),
        "b3": pad2(params["b3"].reshape(1, -1), 1, out_p, jnp.float32),
        "d_in": int(d_in),
        "outputs": int(outputs),
    }


def simple_dqn_forward(x, prepared):
    """x: [B, H, W] (or [B, d_in]) float32.  prepared: output of prepare_params."""
    B = x.shape[0]
    x_flat = x.reshape(B, -1).astype(jnp.float32)      # torch.flatten(x, start_dim=1)
    d_in = x_flat.shape[1]
    assert d_in == prepared["d_in"], (d_in, prepared["d_in"])

    w1, w2, w3 = prepared["w1"], prepared["w2"], prepared["w3"]
    b1, b2, b3 = prepared["b1"], prepared["b2"], prepared["b3"]
    d_in_p, h_p = w1.shape
    out_p = w3.shape[1]
    outputs = prepared["outputs"]

    tb = _pick_tb(B)
    b_p = _round_up(B, tb)
    grid = (b_p // tb,)

    # x stays f32 (single HBM pass); bf16 cast happens in-kernel.
    xb = jnp.pad(x_flat, ((0, b_p - B), (0, d_in_p - d_in)))

    flops = 2 * b_p * (d_in_p * h_p + h_p * h_p + h_p * out_p)
    bytes_accessed = (
        xb.size * 4
        + (w1.size + w2.size) * 2
        + w3.size * 4
        + (b1.size + b2.size + b3.size) * 4
        + b_p * out_p * 4
    )

    out_padded = pl.pallas_call(
        _mlp_kernel,
        out_shape=jax.ShapeDtypeStruct((b_p, out_p), jnp.float32),
        grid=grid,
        in_specs=[
            pl.BlockSpec((tb, d_in_p), lambda i: (i, 0)),      # x tile (pipelined)
            pl.BlockSpec((d_in_p, h_p), lambda i: (0, 0)),     # w1: VMEM-resident
            pl.BlockSpec((1, h_p), lambda i: (0, 0)),          # b1
            pl.BlockSpec((h_p, h_p), lambda i: (0, 0)),        # w2
            pl.BlockSpec((1, h_p), lambda i: (0, 0)),          # b2
            pl.BlockSpec((h_p, out_p), lambda i: (0, 0)),      # w3 (f32)
            pl.BlockSpec((1, out_p), lambda i: (0, 0)),        # b3
        ],
        out_specs=pl.BlockSpec((tb, out_p), lambda i: (i, 0)),
        compiler_params=pltpu.CompilerParams(
            dimension_semantics=("parallel",),                 # v7x: shard batch over 2 TCs
        ),
        cost_estimate=pl.CostEstimate(
            flops=flops, transcendentals=0, bytes_accessed=bytes_accessed),
    )(xb, w1, b1, w2, b2, w3, b3)

    # Strip batch / lane padding (free layout plumbing).
    return out_padded[:B, :outputs]


def init_params(key, h, w, outputs):
    """Deterministic init mimicking PyTorch nn.Linear default (uniform +/- 1/sqrt(fan_in)).
    Weights stored pre-transposed as [in, out] so y = x @ W_t + b."""
    keys = jax.random.split(key, 6)
    d_in = h * w

    def lin(kw, kb, fan_in, fan_out):
        bound = 1.0 / jnp.sqrt(float(fan_in))
        w_t = jax.random.uniform(kw, (fan_in, fan_out), jnp.float32, -bound, bound)
        b = jax.random.uniform(kb, (fan_out,), jnp.float32, -bound, bound)
        return w_t, b

    w1_t, b1 = lin(keys[0], keys[1], d_in, HIDDEN)
    w2_t, b2 = lin(keys[2], keys[3], HIDDEN, HIDDEN)
    w3_t, b3 = lin(keys[4], keys[5], HIDDEN, outputs)
    return {"w1_t": w1_t, "b1": b1, "w2_t": w2_t, "b2": b2, "w3_t": w3_t, "b3": b3}


def reference_forward(x, params):
    """Pure-JAX f32 reference of the PyTorch forward."""
    B = x.shape[0]
    h = x.reshape(B, -1)
    h = jnp.maximum(h @ params["w1_t"] + params["b1"], 0.0)
    h = jnp.maximum(h @ params["w2_t"] + params["b2"], 0.0)
    return h @ params["w3_t"] + params["b3"]


if __name__ == "__main__":
    key = jax.random.PRNGKey(0)
    k_x, k_p, k_x2 = jax.random.split(key, 3)

    B, H, W, OUTPUTS = 2, 16, 16, 8
    x = jax.random.normal(k_x, (B, H, W), dtype=jnp.float32)
    params = init_params(k_p, H, W, OUTPUTS)

    # Pad / cast weights ONCE; reuse across all forward calls.
    prepared = prepare_params(params)

    # Small-batch (acting) path: single grid step, weight-DMA bound.
    out = jax.block_until_ready(simple_dqn_forward(x, prepared))
    ref = reference_forward(x, params)
    assert out.shape == (B, OUTPUTS), out.shape
    # bf16 operands in layers 1-2 (f32 accumulation) -> loosened tolerance vs f32 ref.
    assert jnp.allclose(out, ref, atol=2e-2, rtol=2e-2), (
        "mismatch vs reference (B=2)", float(jnp.max(jnp.abs(out - ref))))
    # Action-selection (argmax) agreement with the f32 reference.
    assert jnp.array_equal(jnp.argmax(out, axis=-1), jnp.argmax(ref, axis=-1))

    # Replay-batch path: adaptive tile -> tb=160, grid=(2,), batch padded to 320 (not 512).
    B2 = 300
    x2 = jax.random.normal(k_x2, (B2, H, W), dtype=jnp.float32)
    out2 = jax.block_until_ready(simple_dqn_forward(x2, prepared))
    ref2 = reference_forward(x2, params)
    assert out2.shape == (B2, OUTPUTS), out2.shape
    assert jnp.allclose(out2, ref2, atol=2e-2, rtol=2e-2), (
        "mismatch vs reference (B=300)", float(jnp.max(jnp.abs(out2 - ref2))))

    print("KERNEL_OK")
</pallas_src>

<mosaic_0001>
module attributes {stable_mosaic.version = 11 : i64} {
  func.func @_mlp_kernel(%arg0: i32, %arg1: memref<8x256xf32, #tpu.memory_space<vmem>>, %arg2: memref<256x512xbf16, #tpu.memory_space<vmem>>, %arg3: memref<1x512xf32, #tpu.memory_space<vmem>>, %arg4: memref<512x512xbf16, #tpu.memory_space<vmem>>, %arg5: memref<1x512xf32, #tpu.memory_space<vmem>>, %arg6: memref<512x128xf32, #tpu.memory_space<vmem>>, %arg7: memref<1x128xf32, #tpu.memory_space<vmem>>, %arg8: memref<8x128xf32, #tpu.memory_space<vmem>>) attributes {dimension_semantics = [#tpu.dimension_semantics<parallel>], iteration_bounds = array<i64: 1>, scalar_prefetch = 0 : i64, scratch_operands = 0 : i64, tpu.core_type = #tpu.core_type<tc>, window_params = [{transform_indices = @transform_0, window_bounds = array<i64: 8, 256>}, {pipeline_mode = #tpu.pipeline_mode<synchronous>, transform_indices = @transform_1, window_bounds = array<i64: 256, 512>}, {pipeline_mode = #tpu.pipeline_mode<synchronous>, transform_indices = @transform_2, window_bounds = array<i64: 1, 512>}, {pipeline_mode = #tpu.pipeline_mode<synchronous>, transform_indices = @transform_3, window_bounds = array<i64: 512, 512>}, {pipeline_mode = #tpu.pipeline_mode<synchronous>, transform_indices = @transform_4, window_bounds = array<i64: 1, 512>}, {pipeline_mode = #tpu.pipeline_mode<synchronous>, transform_indices = @transform_5, window_bounds = array<i64: 512, 128>}, {pipeline_mode = #tpu.pipeline_mode<synchronous>, transform_indices = @transform_6, window_bounds = array<i64: 1, 128>}, {transform_indices = @transform_7, window_bounds = array<i64: 8, 128>}]} {
    %c0 = arith.constant 0 : index
    %c0_0 = arith.constant 0 : index
    %0 = vector.load %arg1[%c0, %c0_0] : memref<8x256xf32, #tpu.memory_space<vmem>>, vector<8x256xf32>
    %1 = arith.truncf %0 : vector<8x256xf32> to vector<8x256xbf16>
    %c0_1 = arith.constant 0 : index
    %c0_2 = arith.constant 0 : index
    %2 = vector.load %arg2[%c0_1, %c0_2] : memref<256x512xbf16, #tpu.memory_space<vmem>>, vector<256x512xbf16>
    %cst = arith.constant dense<0.000000e+00> : vector<8x512xf32>
    %3 = tpu.matmul %1, %2, %cst {dimension_numbers = #tpu.dot_dimension_numbers<[1], [0], [0], [1], [0, 0, 1, 1], [], []>} : vector<8x256xbf16>, vector<256x512xbf16>, vector<8x512xf32> -> vector<8x512xf32>
    %c0_3 = arith.constant 0 : index
    %c0_4 = arith.constant 0 : index
    %4 = vector.load %arg3[%c0_3, %c0_4] : memref<1x512xf32, #tpu.memory_space<vmem>>, vector<1x512xf32>
    %5 = vector.broadcast %4 : vector<1x512xf32> to vector<8x512xf32>
    %6 = arith.addf %3, %5 : vector<8x512xf32>
    %cst_5 = arith.constant 0.000000e+00 : f32
    %7 = vector.broadcast %cst_5 : f32 to vector<8x512xf32>
    %8 = arith.maximumf %6, %7 : vector<8x512xf32>
    %9 = arith.truncf %8 : vector<8x512xf32> to vector<8x512xbf16>
    %c0_6 = arith.constant 0 : index
    %c0_7 = arith.constant 0 : index
    %10 = vector.load %arg4[%c0_6, %c0_7] : memref<512x512xbf16, #tpu.memory_space<vmem>>, vector<512x512xbf16>
    %cst_8 = arith.constant dense<0.000000e+00> : vector<8x512xf32>
    %11 = tpu.matmul %9, %10, %cst_8 {dimension_numbers = #tpu.dot_dimension_numbers<[1], [0], [0], [1], [0, 0, 1, 1], [], []>} : vector<8x512xbf16>, vector<512x512xbf16>, vector<8x512xf32> -> vector<8x512xf32>
    %c0_9 = arith.constant 0 : index
    %c0_10 = arith.constant 0 : index
    %12 = vector.load %arg5[%c0_9, %c0_10] : memref<1x512xf32, #tpu.memory_space<vmem>>, vector<1x512xf32>
    %13 = vector.broadcast %12 : vector<1x512xf32> to vector<8x512xf32>
    %14 = arith.addf %11, %13 : vector<8x512xf32>
    %cst_11 = arith.constant 0.000000e+00 : f32
    %15 = vector.broadcast %cst_11 : f32 to vector<8x512xf32>
    %16 = arith.maximumf %14, %15 : vector<8x512xf32>
    %c0_12 = arith.constant 0 : index
    %c0_13 = arith.constant 0 : index
    %17 = vector.load %arg6[%c0_12, %c0_13] : memref<512x128xf32, #tpu.memory_space<vmem>>, vector<512x128xf32>
    %cst_14 = arith.constant dense<0.000000e+00> : vector<8x128xf32>
    %18 = tpu.matmul %16, %17, %cst_14 {dimension_numbers = #tpu.dot_dimension_numbers<[1], [0], [0], [1], [0, 0, 1, 1], [], []>} : vector<8x512xf32>, vector<512x128xf32>, vector<8x128xf32> -> vector<8x128xf32>
    %c0_15 = arith.constant 0 : index
    %c0_16 = arith.constant 0 : index
    %19 = vector.load %arg7[%c0_15, %c0_16] : memref<1x128xf32, #tpu.memory_space<vmem>>, vector<1x128xf32>
    %20 = vector.broadcast %19 : vector<1x128xf32> to vector<8x128xf32>
    %21 = arith.addf %18, %20 : vector<8x128xf32>
    %c0_17 = arith.constant 0 : index
    %c0_18 = arith.constant 0 : index
    %22 = vector.load %arg8[%c0_17, %c0_18] : memref<8x128xf32, #tpu.memory_space<vmem>>, vector<8x128xf32>
    tpu.vector_store %arg8[%c0_17, %c0_18], %21 {strides = array<i32>} : memref<8x128xf32, #tpu.memory_space<vmem>>, vector<8x128xf32>,
    return
  }
  func.func @transform_0(%arg0: i32) -> (i32, i32) {
    %c0_i32 = arith.constant 0 : i32
    %c0_i32_0 = arith.constant 0 : i32
    return %arg0, %c0_i32 : i32, i32
  }
  func.func @transform_1(%arg0: i32) -> (i32, i32) {
    %c0_i32 = arith.constant 0 : i32
    %c0_i32_0 = arith.constant 0 : i32
    %c0_i32_1 = arith.constant 0 : i32
    return %c0_i32, %c0_i32_0 : i32, i32
  }
  func.func @transform_2(%arg0: i32) -> (i32, i32) {
    %c0_i32 = arith.constant 0 : i32
    %c0_i32_0 = arith.constant 0 : i32
    %c0_i32_1 = arith.constant 0 : i32
    return %c0_i32, %c0_i32_0 : i32, i32
  }
  func.func @transform_3(%arg0: i32) -> (i32, i32) {
    %c0_i32 = arith.constant 0 : i32
    %c0_i32_0 = arith.constant 0 : i32
    %c0_i32_1 = arith.constant 0 : i32
    return %c0_i32, %c0_i32_0 : i32, i32
  }
  func.func @transform_4(%arg0: i32) -> (i32, i32) {
    %c0_i32 = arith.constant 0 : i32
    %c0_i32_0 = arith.constant 0 : i32
    %c0_i32_1 = arith.constant 0 : i32
    return %c0_i32, %c0_i32_0 : i32, i32
  }
  func.func @transform_5(%arg0: i32) -> (i32, i32) {
    %c0_i32 = arith.constant 0 : i32
    %c0_i32_0 = arith.constant 0 : i32
    %c0_i32_1 = arith.constant 0 : i32
    return %c0_i32, %c0_i32_0 : i32, i32
  }
  func.func @transform_6(%arg0: i32) -> (i32, i32) {
    %c0_i32 = arith.constant 0 : i32
    %c0_i32_0 = arith.constant 0 : i32
    %c0_i32_1 = arith.constant 0 : i32
    return %c0_i32, %c0_i32_0 : i32, i32
  }
  func.func @transform_7(%arg0: i32) -> (i32, i32) {
    %c0_i32 = arith.constant 0 : i32
    %c0_i32_0 = arith.constant 0 : i32
    return %arg0, %c0_i32 : i32, i32
  }
}

</mosaic_0001>

<llo_original>
// kernel: tpu_custom_call.1
$region0: #{tpu_custom_call.1}
  #allocation0 [shape = 'u32[]', space=smem, size = 0x4, offset = 0x4, fixed_abs, tag = 'smem constant byte address 0x4 - core index']
  #allocation1 [shape = 'u32[144,128]{1,0:T(1,128)}', space=vmem, size = 0x12000, scoped, tag = 'internal scratch']
  %s0 = inlined_call_operand.hbm [shape: f32[8,256], index: 0, kind: input, shape index: {}]
  %s1 = inlined_call_operand.hbm [shape: bf16[256,512], index: 1, kind: input, shape index: {}]
  %s2 = inlined_call_operand.vmem [shape: f32[1,512], index: 2, kind: input, shape index: {}]
  %s3 = inlined_call_operand.hbm [shape: bf16[512,512], index: 3, kind: input, shape index: {}]
  %s4 = inlined_call_operand.vmem [shape: f32[1,512], index: 4, kind: input, shape index: {}]
  %s5 = inlined_call_operand.hbm [shape: f32[512,128], index: 5, kind: input, shape index: {}]
  %s6 = inlined_call_operand.vmem [shape: f32[1,128], index: 6, kind: input, shape index: {}]
  %s7 = inlined_call_operand.hbm [shape: f32[8,128], index: 7, kind: output, shape index: {}]
  %s8 = sld [smem:[#allocation0]]
  $region54: #{tpu_custom_call.1} parent=0
    _
  %s10 = ssub.s32 1, %s8
  %s11 = scalar_select 0, %s10, %s8
  $region1: #{tpu_custom_call.1} parent=0
    #allocation2 [shape = 'u8[8192]{0}', space=vmem, size = 0x2000, scoped, tag = 'input window, operand 0, single buffered']
    #allocation3 [shape = 's32[1]{0}', space=sflag, size = 0x4, scoped, tag = 'scoped memory for tpu_custom_call.1']
    #allocation4 [shape = 's32[1]{0}', space=sflag, size = 0x4, scoped, tag = 'scoped memory for tpu_custom_call.1']
    #allocation5 [shape = 'u8[262144]{0}', space=vmem, size = 0x40000, scoped, tag = 'input window, operand 1, single buffered']
    #allocation6 [shape = 's32[1]{0}', space=sflag, size = 0x4, scoped, tag = 'scoped memory for tpu_custom_call.1']
    #allocation7 [shape = 'u8[524288]{0}', space=vmem, size = 0x80000, scoped, tag = 'input window, operand 3, single buffered']
    #allocation8 [shape = 'u8[262144]{0}', space=vmem, size = 0x40000, scoped, tag = 'input window, operand 5, single buffered']
    #allocation9 [shape = 's32[1]{0}', space=sflag, size = 0x4, scoped, tag = 'scoped memory for tpu_custom_call.1']
    #allocation10 [shape = 'u8[4096]{0}', space=vmem, size = 0x1000, scoped, tag = 'output window, operand 0, single buffered']
    %12 = vsyncpa [#allocation3], 0
    %13 = vsyncpa [#allocation6], 0
    %14 = vsyncpa [#allocation9], 0
    %15 = vsyncpa [#allocation4], 0
    // Predicated region
    $region2: #{tpu_custom_call.1} parent=1 // pred_check
      _
    $region3: #{tpu_custom_call.1} parent=1 // pred_check_branch
      %17 = sbr.rel (0) target = $region5
    $region4: #{tpu_custom_call.1} parent=1 // pred_region
      %s19 = ssub.s32 256, 256
      %20 = vsyncadd [#allocation3], %s19
      %s22 = sshll.u32 [#allocation2], 4
      %s23 = int_to_ptr.vmem [resolvable:$true] %s22
      %25 = dma.hbm_to_vmem [thread:$0]  %s0, 256, %s23, [#allocation3]
    $region5: #{tpu_custom_call.1} parent=1 // pred_fallthru
      _
    // Predicated region
    $region6: #{tpu_custom_call.1} parent=1 // pred_check
      _
    $region7: #{tpu_custom_call.1} parent=1 // pred_check_branch
      %27 = sbr.rel (0) target = $region9
    $region8: #{tpu_custom_call.1} parent=1 // pred_region
      %s29 = ssub.s32 8192, 8192
      %30 = vsyncadd [#allocation6], %s29
      %s31 = sshll.u32 [#allocation5], 4
      %s32 = int_to_ptr.vmem [resolvable:$true] %s31
      %37 = dma.hbm_to_vmem [thread:$0]  %s1, 8192, %s32, [#allocation6], 256, 256, 16
    $region9: #{tpu_custom_call.1} parent=1 // pred_fallthru
      _
    // Predicated region
    $region10: #{tpu_custom_call.1} parent=1 // pred_check
      _
    $region11: #{tpu_custom_call.1} parent=1 // pred_check_branch
      %39 = sbr.rel (0) target = $region13
    $region12: #{tpu_custom_call.1} parent=1 // pred_region
      _
    $region13: #{tpu_custom_call.1} parent=1 // pred_fallthru
      _
    // Predicated region
    $region14: #{tpu_custom_call.1} parent=1 // pred_check
      _
    $region15: #{tpu_custom_call.1} parent=1 // pred_check_branch
      %41 = sbr.rel (0) target = $region17
    $region16: #{tpu_custom_call.1} parent=1 // pred_region
      %s43 = ssub.s32 16384, 16384
      %44 = vsyncadd [#allocation6], %s43
      %s45 = sshll.u32 [#allocation7], 4
      %s46 = int_to_ptr.vmem [resolvable:$true] %s45
      %51 = dma.hbm_to_vmem [thread:$0]  %s3, 16384, %s46, [#allocation6], 256, 256, 16
    $region17: #{tpu_custom_call.1} parent=1 // pred_fallthru
      _
    // Predicated region
    $region18: #{tpu_custom_call.1} parent=1 // pred_check
      _
    $region19: #{tpu_custom_call.1} parent=1 // pred_check_branch
      %53 = sbr.rel (0) target = $region21
    $region20: #{tpu_custom_call.1} parent=1 // pred_region
      _
    $region21: #{tpu_custom_call.1} parent=1 // pred_fallthru
      _
    // Predicated region
    $region22: #{tpu_custom_call.1} parent=1 // pred_check
      _
    $region23: #{tpu_custom_call.1} parent=1 // pred_check_branch
      %55 = sbr.rel (0) target = $region25
    $region24: #{tpu_custom_call.1} parent=1 // pred_region
      %s57 = ssub.s32 8192, 8192
      %58 = vsyncadd [#allocation9], %s57
      %s59 = sshll.u32 [#allocation8], 4
      %s60 = int_to_ptr.vmem [resolvable:$true] %s59
      %65 = dma.hbm_to_vmem [thread:$0]  %s5, 8192, %s60, [#allocation9], 128, 128, 8
    $region25: #{tpu_custom_call.1} parent=1 // pred_fallthru
      _
    // Predicated region
    $region26: #{tpu_custom_call.1} parent=1 // pred_check
      _
    $region27: #{tpu_custom_call.1} parent=1 // pred_check_branch
      %67 = sbr.rel (0) target = $region29
    $region28: #{tpu_custom_call.1} parent=1 // pred_region
      _
    $region29: #{tpu_custom_call.1} parent=1 // pred_fallthru
      _
    // Predicated region
    $region30: #{tpu_custom_call.1} parent=1 // pred_check
      _
    $region31: #{tpu_custom_call.1} parent=1 // pred_check_branch
      %69 = sbr.rel (0) target = $region33
    $region32: #{tpu_custom_call.1} parent=1 // pred_region
      %70 = dma.done [#allocation3], 256
    $region33: #{tpu_custom_call.1} parent=1 // pred_fallthru
      _
    // Predicated region
    $region34: #{tpu_custom_call.1} parent=1 // pred_check
      _
    $region35: #{tpu_custom_call.1} parent=1 // pred_check_branch
      %72 = sbr.rel (0) target = $region37
    $region36: #{tpu_custom_call.1} parent=1 // pred_region
      %73 = dma.done [#allocation6], 8192
    $region37: #{tpu_custom_call.1} parent=1 // pred_fallthru
      _
    // Predicated region
    $region38: #{tpu_custom_call.1} parent=1 // pred_check
      _
    $region39: #{tpu_custom_call.1} parent=1 // pred_check_branch
      %75 = sbr.rel (0) target = $region41
    $region40: #{tpu_custom_call.1} parent=1 // pred_region
      %76 = dma.done [#allocation6], 16384
    $region41: #{tpu_custom_call.1} parent=1 // pred_fallthru
      _
    // Predicated region
    $region42: #{tpu_custom_call.1} parent=1 // pred_check
      _
    $region43: #{tpu_custom_call.1} parent=1 // pred_check_branch
      %78 = sbr.rel (0) target = $region45
    $region44: #{tpu_custom_call.1} parent=1 // pred_region
      %79 = dma.done [#allocation9], 8192
    $region45: #{tpu_custom_call.1} parent=1 // pred_fallthru
      _
    %v80 = vld [vmem:[#allocation2] sm:$0xff]
    %v81 = vld [vmem:[#allocation2 + $0x8] sm:$0xff]
    %v82 = vpack.c.bf16 %v80, %v80
    %v83 = vpack.c.bf16 %v81, %v81
    %v84 = vld [vmem:[#allocation5] sm:$0xff]
    %v85 = vld [vmem:[#allocation5 + $0x8] sm:$0xff]
    %v86 = vld [vmem:[#allocation5 + $0x10] sm:$0xff]
    %v87 = vld [vmem:[#allocation5 + $0x18] sm:$0xff]
    %v88 = vld [vmem:[#allocation5 + $0x20] sm:$0xff]
    %v89 = vld [vmem:[#allocation5 + $0x28] sm:$0xff]
    %v90 = vld [vmem:[#allocation5 + $0x30] sm:$0xff]
    %v91 = vld [vmem:[#allocation5 + $0x38] sm:$0xff]
    %v92 = vld [vmem:[#allocation5 + $0x40] sm:$0xff]
    %v93 = vld [vmem:[#allocation5 + $0x48] sm:$0xff]
    %v94 = vld [vmem:[#allocation5 + $0x50] sm:$0xff]
    %v95 = vld [vmem:[#allocation5 + $0x58] sm:$0xff]
    %v96 = vld [vmem:[#allocation5 + $0x60] sm:$0xff]
    %v97 = vld [vmem:[#allocation5 + $0x68] sm:$0xff]
    %v98 = vld [vmem:[#allocation5 + $0x70] sm:$0xff]
    %v99 = vld [vmem:[#allocation5 + $0x78] sm:$0xff]
    %v100 = vld [vmem:[#allocation5 + $0x80] sm:$0xff]
    %v101 = vld [vmem:[#allocation5 + $0x88] sm:$0xff]
    %v102 = vld [vmem:[#allocation5 + $0x90] sm:$0xff]
    %v103 = vld [vmem:[#allocation5 + $0x98] sm:$0xff]
    %v104 = vld [vmem:[#allocation5 + $0xa0] sm:$0xff]
    %v105 = vld [vmem:[#allocation5 + $0xa8] sm:$0xff]
    %v106 = vld [vmem:[#allocation5 + $0xb0] sm:$0xff]
    %v107 = vld [vmem:[#allocation5 + $0xb8] sm:$0xff]
    %v108 = vld [vmem:[#allocation5 + $0xc0] sm:$0xff]
    %v109 = vld [vmem:[#allocation5 + $0xc8] sm:$0xff]
    %v110 = vld [vmem:[#allocation5 + $0xd0] sm:$0xff]
    %v111 = vld [vmem:[#allocation5 + $0xd8] sm:$0xff]
    %v112 = vld [vmem:[#allocation5 + $0xe0] sm:$0xff]
    %v113 = vld [vmem:[#allocation5 + $0xe8] sm:$0xff]
    %v114 = vld [vmem:[#allocation5 + $0xf0] sm:$0xff]
    %v115 = vld [vmem:[#allocation5 + $0xf8] sm:$0xff]
    %v116 = vld [vmem:[#allocation5 + $0x100] sm:$0xff]
    %v117 = vld [vmem:[#allocation5 + $0x108] sm:$0xff]
    %v118 = vld [vmem:[#allocation5 + $0x110] sm:$0xff]
    %v119 = vld [vmem:[#allocation5 + $0x118] sm:$0xff]
    %v120 = vld [vmem:[#allocation5 + $0x120] sm:$0xff]
    %v121 = vld [vmem:[#allocation5 + $0x128] sm:$0xff]
    %v122 = vld [vmem:[#allocation5 + $0x130] sm:$0xff]
    %v123 = vld [vmem:[#allocation5 + $0x138] sm:$0xff]
    %v124 = vld [vmem:[#allocation5 + $0x140] sm:$0xff]
    %v125 = vld [vmem:[#allocation5 + $0x148] sm:$0xff]
    %v126 = vld [vmem:[#allocation5 + $0x150] sm:$0xff]
    %v127 = vld [vmem:[#allocation5 + $0x158] sm:$0xff]
    %v128 = vld [vmem:[#allocation5 + $0x160] sm:$0xff]
    %v129 = vld [vmem:[#allocation5 + $0x168] sm:$0xff]
    %v130 = vld [vmem:[#allocation5 + $0x170] sm:$0xff]
    %v131 = vld [vmem:[#allocation5 + $0x178] sm:$0xff]
    %v132 = vld [vmem:[#allocation5 + $0x180] sm:$0xff]
    %v133 = vld [vmem:[#allocation5 + $0x188] sm:$0xff]
    %v134 = vld [vmem:[#allocation5 + $0x190] sm:$0xff]
    %v135 = vld [vmem:[#allocation5 + $0x198] sm:$0xff]
    %v136 = vld [vmem:[#allocation5 + $0x1a0] sm:$0xff]
    %v137 = vld [vmem:[#allocation5 + $0x1a8] sm:$0xff]
    %v138 = vld [vmem:[#allocation5 + $0x1b0] sm:$0xff]
    %v139 = vld [vmem:[#allocation5 + $0x1b8] sm:$0xff]
    %v140 = vld [vmem:[#allocation5 + $0x1c0] sm:$0xff]
    %v141 = vld [vmem:[#allocation5 + $0x1c8] sm:$0xff]
    %v142 = vld [vmem:[#allocation5 + $0x1d0] sm:$0xff]
    %v143 = vld [vmem:[#allocation5 + $0x1d8] sm:$0xff]
    %v144 = vld [vmem:[#allocation5 + $0x1e0] sm:$0xff]
    %v145 = vld [vmem:[#allocation5 + $0x1e8] sm:$0xff]
    %v146 = vld [vmem:[#allocation5 + $0x1f0] sm:$0xff]
    %v147 = vld [vmem:[#allocation5 + $0x1f8] sm:$0xff]
    %v148 = vld [vmem:[%s2] sm:$0xf]
    %v150 = vlaneseq
    %v151 = vshrl.u32 %v150, 7
    %v152 = vsub.s32 0, %v151
    %v153 = vrot.slane %v148, %v152
    %v154 = vlaneseq
    %v155 = vshrl.u32 %v154, 7
    %v156 = vsub.s32 1, %v155
    %v157 = vrot.slane %v148, %v156
    %v158 = vlaneseq
    %v159 = vshrl.u32 %v158, 7
    %v160 = vsub.s32 2, %v159
    %v161 = vrot.slane %v148, %v160
    %v162 = vlaneseq
    %v163 = vshrl.u32 %v162, 7
    %v164 = vsub.s32 3, %v163
    %v165 = vrot.slane %v148, %v164
    %v234 = vunpack.c.l.b16 %v84
    %v235 = vunpack.c.h.b16 %v84
    %v236 = vunpack.c.l.b16 %v85
    %v237 = vunpack.c.h.b16 %v85
    %v238 = vunpack.c.l.b16 %v86
    %v239 = vunpack.c.h.b16 %v86
    %v240 = vunpack.c.l.b16 %v87
    %v241 = vunpack.c.h.b16 %v87
    %v242 = vunpack.c.l.b16 %v88
    %v243 = vunpack.c.h.b16 %v88
    %v244 = vunpack.c.l.b16 %v89
    %v245 = vunpack.c.h.b16 %v89
    %v246 = vunpack.c.l.b16 %v90
    %v247 = vunpack.c.h.b16 %v90
    %v248 = vunpack.c.l.b16 %v91
    %v249 = vunpack.c.h.b16 %v91
    %v250 = vunpack.c.l.b16 %v92
    %v251 = vunpack.c.h.b16 %v92
    %v252 = vunpack.c.l.b16 %v93
    %v253 = vunpack.c.h.b16 %v93
    %v254 = vunpack.c.l.b16 %v94
    %v255 = vunpack.c.h.b16 %v94
    %v256 = vunpack.c.l.b16 %v95
    %v257 = vunpack.c.h.b16 %v95
    %v258 = vunpack.c.l.b16 %v96
    %v259 = vunpack.c.h.b16 %v96
    %v260 = vunpack.c.l.b16 %v97
    %v261 = vunpack.c.h.b16 %v97
    %v262 = vunpack.c.l.b16 %v98
    %v263 = vunpack.c.h.b16 %v98
    %v264 = vunpack.c.l.b16 %v99
    %v265 = vunpack.c.h.b16 %v99
    %v266 = vunpack.c.l.b16 %v100
    %v267 = vunpack.c.h.b16 %v100
    %v268 = vunpack.c.l.b16 %v101
    %v269 = vunpack.c.h.b16 %v101
    %v270 = vunpack.c.l.b16 %v102
    %v271 = vunpack.c.h.b16 %v102
    %v272 = vunpack.c.l.b16 %v103
    %v273 = vunpack.c.h.b16 %v103
    %v274 = vunpack.c.l.b16 %v104
    %v275 = vunpack.c.h.b16 %v104
    %v276 = vunpack.c.l.b16 %v105
    %v277 = vunpack.c.h.b16 %v105
    %v278 = vunpack.c.l.b16 %v106
    %v279 = vunpack.c.h.b16 %v106
    %v280 = vunpack.c.l.b16 %v107
    %v281 = vunpack.c.h.b16 %v107
    %v282 = vunpack.c.l.b16 %v108
    %v283 = vunpack.c.h.b16 %v108
    %v284 = vunpack.c.l.b16 %v109
    %v285 = vunpack.c.h.b16 %v109
    %v286 = vunpack.c.l.b16 %v110
    %v287 = vunpack.c.h.b16 %v110
    %v288 = vunpack.c.l.b16 %v111
    %v289 = vunpack.c.h.b16 %v111
    %v290 = vunpack.c.l.b16 %v112
    %v291 = vunpack.c.h.b16 %v112
    %v292 = vunpack.c.l.b16 %v113
    %v293 = vunpack.c.h.b16 %v113
    %v294 = vunpack.c.l.b16 %v114
    %v295 = vunpack.c.h.b16 %v114
    %v296 = vunpack.c.l.b16 %v115
    %v297 = vunpack.c.h.b16 %v115
    %v298 = vunpack.c.l.b16 %v116
    %v299 = vunpack.c.h.b16 %v116
    %v300 = vunpack.c.l.b16 %v117
    %v301 = vunpack.c.h.b16 %v117
    %v302 = vunpack.c.l.b16 %v118
    %v303 = vunpack.c.h.b16 %v118
    %v304 = vunpack.c.l.b16 %v119
    %v305 = vunpack.c.h.b16 %v119
    %v306 = vunpack.c.l.b16 %v120
    %v307 = vunpack.c.h.b16 %v120
    %v308 = vunpack.c.l.b16 %v121
    %v309 = vunpack.c.h.b16 %v121
    %v310 = vunpack.c.l.b16 %v122
    %v311 = vunpack.c.h.b16 %v122
    %v312 = vunpack.c.l.b16 %v123
    %v313 = vunpack.c.h.b16 %v123
    %v314 = vunpack.c.l.b16 %v124
    %v315 = vunpack.c.h.b16 %v124
    %v316 = vunpack.c.l.b16 %v125
    %v317 = vunpack.c.h.b16 %v125
    %v318 = vunpack.c.l.b16 %v126
    %v319 = vunpack.c.h.b16 %v126
    %v320 = vunpack.c.l.b16 %v127
    %v321 = vunpack.c.h.b16 %v127
    %v322 = vunpack.c.l.b16 %v128
    %v323 = vunpack.c.h.b16 %v128
    %v324 = vunpack.c.l.b16 %v129
    %v325 = vunpack.c.h.b16 %v129
    %v326 = vunpack.c.l.b16 %v130
    %v327 = vunpack.c.h.b16 %v130
    %v328 = vunpack.c.l.b16 %v131
    %v329 = vunpack.c.h.b16 %v131
    %v330 = vunpack.c.l.b16 %v132
    %v331 = vunpack.c.h.b16 %v132
    %v332 = vunpack.c.l.b16 %v133
    %v333 = vunpack.c.h.b16 %v133
    %v334 = vunpack.c.l.b16 %v134
    %v335 = vunpack.c.h.b16 %v134
    %v336 = vunpack.c.l.b16 %v135
    %v337 = vunpack.c.h.b16 %v135
    %v338 = vunpack.c.l.b16 %v136
    %v339 = vunpack.c.h.b16 %v136
    %v340 = vunpack.c.l.b16 %v137
    %v341 = vunpack.c.h.b16 %v137
    %v342 = vunpack.c.l.b16 %v138
    %v343 = vunpack.c.h.b16 %v138
    %v344 = vunpack.c.l.b16 %v139
    %v345 = vunpack.c.h.b16 %v139
    %v346 = vunpack.c.l.b16 %v140
    %v347 = vunpack.c.h.b16 %v140
    %v348 = vunpack.c.l.b16 %v141
    %v349 = vunpack.c.h.b16 %v141
    %v350 = vunpack.c.l.b16 %v142
    %v351 = vunpack.c.h.b16 %v142
    %v352 = vunpack.c.l.b16 %v143
    %v353 = vunpack.c.h.b16 %v143
    %v354 = vunpack.c.l.b16 %v144
    %v355 = vunpack.c.h.b16 %v144
    %v356 = vunpack.c.l.b16 %v145
    %v357 = vunpack.c.h.b16 %v145
    %v358 = vunpack.c.l.b16 %v146
    %v359 = vunpack.c.h.b16 %v146
    %v360 = vunpack.c.l.b16 %v147
    %v361 = vunpack.c.h.b16 %v147
    %v362 = vpack.c.b16 %v238, %v234
    %v363 = vpack.c.b16 %v239, %v235
    %v364 = vpack.c.b16 %v240, %v236
    %v365 = vpack.c.b16 %v241, %v237
    %v366 = vpack.c.b16 %v246, %v242
    %v367 = vpack.c.b16 %v247, %v243
    %v368 = vpack.c.b16 %v248, %v244
    %v369 = vpack.c.b16 %v249, %v245
    %v370 = vpack.c.b16 %v254, %v250
    %v371 = vpack.c.b16 %v255, %v251
    %v372 = vpack.c.b16 %v256, %v252
    %v373 = vpack.c.b16 %v257, %v253
    %v374 = vpack.c.b16 %v262, %v258
    %v375 = vpack.c.b16 %v263, %v259
    %v376 = vpack.c.b16 %v264, %v260
    %v377 = vpack.c.b16 %v265, %v261
    %v378 = vpack.c.b16 %v270, %v266
    %v379 = vpack.c.b16 %v271, %v267
    %v380 = vpack.c.b16 %v272, %v268
    %v381 = vpack.c.b16 %v273, %v269
    %v382 = vpack.c.b16 %v278, %v274
    %v383 = vpack.c.b16 %v279, %v275
    %v384 = vpack.c.b16 %v280, %v276
    %v385 = vpack.c.b16 %v281, %v277
    %v386 = vpack.c.b16 %v286, %v282
    %v387 = vpack.c.b16 %v287, %v283
    %v388 = vpack.c.b16 %v288, %v284
    %v389 = vpack.c.b16 %v289, %v285
    %v390 = vpack.c.b16 %v294, %v290
    %v391 = vpack.c.b16 %v295, %v291
    %v392 = vpack.c.b16 %v296, %v292
    %v393 = vpack.c.b16 %v297, %v293
    %v394 = vpack.c.b16 %v302, %v298
    %v395 = vpack.c.b16 %v303, %v299
    %v396 = vpack.c.b16 %v304, %v300
    %v397 = vpack.c.b16 %v305, %v301
    %v398 = vpack.c.b16 %v310, %v306
    %v399 = vpack.c.b16 %v311, %v307
    %v400 = vpack.c.b16 %v312, %v308
    %v401 = vpack.c.b16 %v313, %v309
    %v402 = vpack.c.b16 %v318, %v314
    %v403 = vpack.c.b16 %v319, %v315
    %v404 = vpack.c.b16 %v320, %v316
    %v405 = vpack.c.b16 %v321, %v317
    %v406 = vpack.c.b16 %v326, %v322
    %v407 = vpack.c.b16 %v327, %v323
    %v408 = vpack.c.b16 %v328, %v324
    %v409 = vpack.c.b16 %v329, %v325
    %v410 = vpack.c.b16 %v334, %v330
    %v411 = vpack.c.b16 %v335, %v331
    %v412 = vpack.c.b16 %v336, %v332
    %v413 = vpack.c.b16 %v337, %v333
    %v414 = vpack.c.b16 %v342, %v338
    %v415 = vpack.c.b16 %v343, %v339
    %v416 = vpack.c.b16 %v344, %v340
    %v417 = vpack.c.b16 %v345, %v341
    %v418 = vpack.c.b16 %v350, %v346
    %v419 = vpack.c.b16 %v351, %v347
    %v420 = vpack.c.b16 %v352, %v348
    %v421 = vpack.c.b16 %v353, %v349
    %v422 = vpack.c.b16 %v358, %v354
    %v423 = vpack.c.b16 %v359, %v355
    %v424 = vpack.c.b16 %v360, %v356
    %v425 = vpack.c.b16 %v361, %v357
    %490 = vmatprep.subr.bf16.mxu0 %v363
    %491 = vmatpush1.bf16.msra.mxu0 %v362
    %492 = vmatprep.subr.bf16.mxu0 %v367
    %493 = vmatpush1.bf16.msra.mxu0 %v366
    %494 = vmatprep.subr.bf16.mxu0 %v371
    %495 = vmatpush1.bf16.msra.mxu0 %v370
    %496 = vmatprep.subr.bf16.mxu0 %v375
    %497 = vmatpush1.bf16.msra.mxu0 %v374
    %498 = vmatprep.subr.bf16.mxu0 %v379
    %499 = vmatpush1.bf16.msra.mxu0 %v378
    %500 = vmatprep.subr.bf16.mxu0 %v383
    %501 = vmatpush1.bf16.msra.mxu0 %v382
    %502 = vmatprep.subr.bf16.mxu0 %v387
    %503 = vmatpush1.bf16.msra.mxu0 %v386
    %504 = vmatprep.subr.bf16.mxu0 %v391
    %505 = vmatpush1.bf16.msra.mxu0 %v390
    %506 = vmatprep.subr.bf16.mxu0 %v395
    %507 = vmatpush1.bf16.msra.mxu0 %v394
    %508 = vmatprep.subr.bf16.mxu0 %v399
    %509 = vmatpush1.bf16.msra.mxu0 %v398
    %510 = vmatprep.subr.bf16.mxu0 %v403
    %511 = vmatpush1.bf16.msra.mxu0 %v402
    %512 = vmatprep.subr.bf16.mxu0 %v407
    %513 = vmatpush1.bf16.msra.mxu0 %v406
    %514 = vmatprep.subr.bf16.mxu0 %v411
    %515 = vmatpush1.bf16.msra.mxu0 %v410
    %516 = vmatprep.subr.bf16.mxu0 %v415
    %517 = vmatpush1.bf16.msra.mxu0 %v414
    %518 = vmatprep.subr.bf16.mxu0 %v419
    %519 = vmatpush1.bf16.msra.mxu0 %v418
    %520 = vmatprep.subr.bf16.mxu0 %v423
    %521 = vmatpush1.bf16.msra.mxu0 %v422
    %522 = vmatprep.mubr.bf16.mxu0 %v83
    %523 = vmatmul.mubr.bf16.gmra.mrb[0].mxu0 %v82
    %v524 = vpop.f32.mrb[0].mxu0
    %v525 = vadd.f32 %v153, %v524
    %v526 = vpop.f32.mrb[0].mxu0
    %v527 = vadd.f32 %v157, %v526
    %v528 = vpop.f32.mrb[0].mxu0
    %v529 = vpop.f32.mrb[0].mxu0
    %530 = vdwg.mxu0
    %531 = vmatprep.subr.bf16.mxu0 %v365
    %532 = vmatpush1.bf16.msra.mxu0 %v364
    %533 = vmatprep.subr.bf16.mxu0 %v369
    %534 = vmatpush1.bf16.msra.mxu0 %v368
    %535 = vmatprep.subr.bf16.mxu0 %v373
    %536 = vmatpush1.bf16.msra.mxu0 %v372
    %537 = vmatprep.subr.bf16.mxu0 %v377
    %538 = vmatpush1.bf16.msra.mxu0 %v376
    %539 = vmatprep.subr.bf16.mxu0 %v381
    %540 = vmatpush1.bf16.msra.mxu0 %v380
    %541 = vmatprep.subr.bf16.mxu0 %v385
    %542 = vmatpush1.bf16.msra.mxu0 %v384
    %543 = vmatprep.subr.bf16.mxu0 %v389
    %544 = vmatpush1.bf16.msra.mxu0 %v388
    %545 = vmatprep.subr.bf16.mxu0 %v393
    %546 = vmatpush1.bf16.msra.mxu0 %v392
    %547 = vmatprep.subr.bf16.mxu0 %v397
    %548 = vmatpush1.bf16.msra.mxu0 %v396
    %549 = vmatprep.subr.bf16.mxu0 %v401
    %550 = vmatpush1.bf16.msra.mxu0 %v400
    %551 = vmatprep.subr.bf16.mxu0 %v405
    %552 = vmatpush1.bf16.msra.mxu0 %v404
    %553 = vmatprep.subr.bf16.mxu0 %v409
    %554 = vmatpush1.bf16.msra.mxu0 %v408
    %555 = vmatprep.subr.bf16.mxu0 %v413
    %556 = vmatpush1.bf16.msra.mxu0 %v412
    %557 = vmatprep.subr.bf16.mxu0 %v417
    %558 = vmatpush1.bf16.msra.mxu0 %v416
    %559 = vmatprep.subr.bf16.mxu0 %v421
    %560 = vmatpush1.bf16.msra.mxu0 %v420
    %561 = vmatprep.subr.bf16.mxu0 %v425
    %562 = vmatpush1.bf16.msra.mxu0 %v424
    %563 = vmatprep.mubr.bf16.mxu0 %v83
    %564 = vmatmul.mubr.bf16.gmra.mrb[0].mxu0 %v82
    %v565 = vpop.f32.mrb[0].mxu0
    %v566 = vadd.f32 %v161, %v565
    %v567 = vpop.f32.mrb[0].mxu0
    %v568 = vadd.f32 %v165, %v567
    %v569 = vpop.f32.mrb[0].mxu0
    %v570 = vpop.f32.mrb[0].mxu0
    %571 = vdwg.mxu0
    %v572 = vmax.f32 %v525, 0.0
    %v573 = vmax.f32 %v527, 0.0
    %v574 = vmax.f32 %v566, 0.0
    %v575 = vmax.f32 %v568, 0.0
    %v576 = vpack.c.bf16 %v572, %v572
    %v577 = vpack.c.bf16 %v573, %v573
    %v578 = vpack.c.bf16 %v574, %v574
    %v579 = vpack.c.bf16 %v575, %v575
    %v580 = vld [vmem:[#allocation7] sm:$0xff]
    %v581 = vld [vmem:[#allocation7 + $0x8] sm:$0xff]
    %v582 = vld [vmem:[#allocation7 + $0x10] sm:$0xff]
    %v583 = vld [vmem:[#allocation7 + $0x18] sm:$0xff]
    %v584 = vld [vmem:[#allocation7 + $0x20] sm:$0xff]
    %v585 = vld [vmem:[#allocation7 + $0x28] sm:$0xff]
    %v586 = vld [vmem:[#allocation7 + $0x30] sm:$0xff]
    %v587 = vld [vmem:[#allocation7 + $0x38] sm:$0xff]
    %v588 = vld [vmem:[#allocation7 + $0x40] sm:$0xff]
    %v589 = vld [vmem:[#allocation7 + $0x48] sm:$0xff]
    %v590 = vld [vmem:[#allocation7 + $0x50] sm:$0xff]
    %v591 = vld [vmem:[#allocation7 + $0x58] sm:$0xff]
    %v592 = vld [vmem:[#allocation7 + $0x60] sm:$0xff]
    %v593 = vld [vmem:[#allocation7 + $0x68] sm:$0xff]
    %v594 = vld [vmem:[#allocation7 + $0x70] sm:$0xff]
    %v595 = vld [vmem:[#allocation7 + $0x78] sm:$0xff]
    %v596 = vld [vmem:[#allocation7 + $0x80] sm:$0xff]
    %v597 = vld [vmem:[#allocation7 + $0x88] sm:$0xff]
    %v598 = vld [vmem:[#allocation7 + $0x90] sm:$0xff]
    %v599 = vld [vmem:[#allocation7 + $0x98] sm:$0xff]
    %v600 = vld [vmem:[#allocation7 + $0xa0] sm:$0xff]
    %v601 = vld [vmem:[#allocation7 + $0xa8] sm:$0xff]
    %v602 = vld [vmem:[#allocation7 + $0xb0] sm:$0xff]
    %v603 = vld [vmem:[#allocation7 + $0xb8] sm:$0xff]
    %v604 = vld [vmem:[#allocation7 + $0xc0] sm:$0xff]
    %v605 = vld [vmem:[#allocation7 + $0xc8] sm:$0xff]
    %v606 = vld [vmem:[#allocation7 + $0xd0] sm:$0xff]
    %v607 = vld [vmem:[#allocation7 + $0xd8] sm:$0xff]
    %v608 = vld [vmem:[#allocation7 + $0xe0] sm:$0xff]
    %v609 = vld [vmem:[#allocation7 + $0xe8] sm:$0xff]
    %v610 = vld [vmem:[#allocation7 + $0xf0] sm:$0xff]
    %v611 = vld [vmem:[#allocation7 + $0xf8] sm:$0xff]
    %v612 = vld [vmem:[#allocation7 + $0x100] sm:$0xff]
    %v613 = vld [vmem:[#allocation7 + $0x108] sm:$0xff]
    %v614 = vld [vmem:[#allocation7 + $0x110] sm:$0xff]
    %v615 = vld [vmem:[#allocation7 + $0x118] sm:$0xff]
    %v616 = vld [vmem:[#allocation7 + $0x120] sm:$0xff]
    %v617 = vld [vmem:[#allocation7 + $0x128] sm:$0xff]
    %v618 = vld [vmem:[#allocation7 + $0x130] sm:$0xff]
    %v619 = vld [vmem:[#allocation7 + $0x138] sm:$0xff]
    %v620 = vld [vmem:[#allocation7 + $0x140] sm:$0xff]
    %v621 = vld [vmem:[#allocation7 + $0x148] sm:$0xff]
    %v622 = vld [vmem:[#allocation7 + $0x150] sm:$0xff]
    %v623 = vld [vmem:[#allocation7 + $0x158] sm:$0xff]
    %v624 = vld [vmem:[#allocation7 + $0x160] sm:$0xff]
    %v625 = vld [vmem:[#allocation7 + $0x168] sm:$0xff]
    %v626 = vld [vmem:[#allocation7 + $0x170] sm:$0xff]
    %v627 = vld [vmem:[#allocation7 + $0x178] sm:$0xff]
    %v628 = vld [vmem:[#allocation7 + $0x180] sm:$0xff]
    %v629 = vld [vmem:[#allocation7 + $0x188] sm:$0xff]
    %v630 = vld [vmem:[#allocation7 + $0x190] sm:$0xff]
    %v631 = vld [vmem:[#allocation7 + $0x198] sm:$0xff]
    %v632 = vld [vmem:[#allocation7 + $0x1a0] sm:$0xff]
    %v633 = vld [vmem:[#allocation7 + $0x1a8] sm:$0xff]
    %v634 = vld [vmem:[#allocation7 + $0x1b0] sm:$0xff]
    %v635 = vld [vmem:[#allocation7 + $0x1b8] sm:$0xff]
    %v636 = vld [vmem:[#allocation7 + $0x1c0] sm:$0xff]
    %v637 = vld [vmem:[#allocation7 + $0x1c8] sm:$0xff]
    %v638 = vld [vmem:[#allocation7 + $0x1d0] sm:$0xff]
    %v639 = vld [vmem:[#allocation7 + $0x1d8] sm:$0xff]
    %v640 = vld [vmem:[#allocation7 + $0x1e0] sm:$0xff]
    %v641 = vld [vmem:[#allocation7 + $0x1e8] sm:$0xff]
    %v642 = vld [vmem:[#allocation7 + $0x1f0] sm:$0xff]
    %v643 = vld [vmem:[#allocation7 + $0x1f8] sm:$0xff]
    %v644 = vld [vmem:[#allocation7 + $0x200] sm:$0xff]
    %v645 = vld [vmem:[#allocation7 + $0x208] sm:$0xff]
    %v646 = vld [vmem:[#allocation7 + $0x210] sm:$0xff]
    %v647 = vld [vmem:[#allocation7 + $0x218] sm:$0xff]
    %v648 = vld [vmem:[#allocation7 + $0x220] sm:$0xff]
    %v649 = vld [vmem:[#allocation7 + $0x228] sm:$0xff]
    %v650 = vld [vmem:[#allocation7 + $0x230] sm:$0xff]
    %v651 = vld [vmem:[#allocation7 + $0x238] sm:$0xff]
    %v652 = vld [vmem:[#allocation7 + $0x240] sm:$0xff]
    %v653 = vld [vmem:[#allocation7 + $0x248] sm:$0xff]
    %v654 = vld [vmem:[#allocation7 + $0x250] sm:$0xff]
    %v655 = vld [vmem:[#allocation7 + $0x258] sm:$0xff]
    %v656 = vld [vmem:[#allocation7 + $0x260] sm:$0xff]
    %v657 = vld [vmem:[#allocation7 + $0x268] sm:$0xff]
    %v658 = vld [vmem:[#allocation7 + $0x270] sm:$0xff]
    %v659 = vld [vmem:[#allocation7 + $0x278] sm:$0xff]
    %v660 = vld [vmem:[#allocation7 + $0x280] sm:$0xff]
    %v661 = vld [vmem:[#allocation7 + $0x288] sm:$0xff]
    %v662 = vld [vmem:[#allocation7 + $0x290] sm:$0xff]
    %v663 = vld [vmem:[#allocation7 + $0x298] sm:$0xff]
    %v664 = vld [vmem:[#allocation7 + $0x2a0] sm:$0xff]
    %v665 = vld [vmem:[#allocation7 + $0x2a8] sm:$0xff]
    %v666 = vld [vmem:[#allocation7 + $0x2b0] sm:$0xff]
    %v667 = vld [vmem:[#allocation7 + $0x2b8] sm:$0xff]
    %v668 = vld [vmem:[#allocation7 + $0x2c0] sm:$0xff]
    %v669 = vld [vmem:[#allocation7 + $0x2c8] sm:$0xff]
    %v670 = vld [vmem:[#allocation7 + $0x2d0] sm:$0xff]
    %v671 = vld [vmem:[#allocation7 + $0x2d8] sm:$0xff]
    %v672 = vld [vmem:[#allocation7 + $0x2e0] sm:$0xff]
    %v673 = vld [vmem:[#allocation7 + $0x2e8] sm:$0xff]
    %v674 = vld [vmem:[#allocation7 + $0x2f0] sm:$0xff]
    %v675 = vld [vmem:[#allocation7 + $0x2f8] sm:$0xff]
    %v676 = vld [vmem:[#allocation7 + $0x300] sm:$0xff]
    %v677 = vld [vmem:[#allocation7 + $0x308] sm:$0xff]
    %v678 = vld [vmem:[#allocation7 + $0x310] sm:$0xff]
    %v679 = vld [vmem:[#allocation7 + $0x318] sm:$0xff]
    %v680 = vld [vmem:[#allocation7 + $0x320] sm:$0xff]
    %v681 = vld [vmem:[#allocation7 + $0x328] sm:$0xff]
    %v682 = vld [vmem:[#allocation7 + $0x330] sm:$0xff]
    %v683 = vld [vmem:[#allocation7 + $0x338] sm:$0xff]
    %v684 = vld [vmem:[#allocation7 + $0x340] sm:$0xff]
    %v685 = vld [vmem:[#allocation7 + $0x348] sm:$0xff]
    %v686 = vld [vmem:[#allocation7 + $0x350] sm:$0xff]
    %v687 = vld [vmem:[#allocation7 + $0x358] sm:$0xff]
    %v688 = vld [vmem:[#allocation7 + $0x360] sm:$0xff]
    %v689 = vld [vmem:[#allocation7 + $0x368] sm:$0xff]
    %v690 = vld [vmem:[#allocation7 + $0x370] sm:$0xff]
    %v691 = vld [vmem:[#allocation7 + $0x378] sm:$0xff]
    %v692 = vld [vmem:[#allocation7 + $0x380] sm:$0xff]
    %v693 = vld [vmem:[#allocation7 + $0x388] sm:$0xff]
    %v694 = vld [vmem:[#allocation7 + $0x390] sm:$0xff]
    %v695 = vld [vmem:[#allocation7 + $0x398] sm:$0xff]
    %v696 = vld [vmem:[#allocation7 + $0x3a0] sm:$0xff]
    %v697 = vld [vmem:[#allocation7 + $0x3a8] sm:$0xff]
    %v698 = vld [vmem:[#allocation7 + $0x3b0] sm:$0xff]
    %v699 = vld [vmem:[#allocation7 + $0x3b8] sm:$0xff]
    %v700 = vld [vmem:[#allocation7 + $0x3c0] sm:$0xff]
    %v701 = vld [vmem:[#allocation7 + $0x3c8] sm:$0xff]
    %v702 = vld [vmem:[#allocation7 + $0x3d0] sm:$0xff]
    %v703 = vld [vmem:[#allocation7 + $0x3d8] sm:$0xff]
    %v704 = vld [vmem:[#allocation7 + $0x3e0] sm:$0xff]
    %v705 = vld [vmem:[#allocation7 + $0x3e8] sm:$0xff]
    %v706 = vld [vmem:[#allocation7 + $0x3f0] sm:$0xff]
    %v707 = vld [vmem:[#allocation7 + $0x3f8] sm:$0xff]
    %v708 = vld [vmem:[%s4] sm:$0xf]
    %v710 = vlaneseq
    %v711 = vshrl.u32 %v710, 7
    %v712 = vsub.s32 0, %v711
    %v713 = vrot.slane %v708, %v712
    %v714 = vlaneseq
    %v715 = vshrl.u32 %v714, 7
    %v716 = vsub.s32 1, %v715
    %v717 = vrot.slane %v708, %v716
    %v718 = vlaneseq
    %v719 = vshrl.u32 %v718, 7
    %v720 = vsub.s32 2, %v719
    %v721 = vrot.slane %v708, %v720
    %v722 = vlaneseq
    %v723 = vshrl.u32 %v722, 7
    %v724 = vsub.s32 3, %v723
    %v725 = vrot.slane %v708, %v724
    %v858 = vunpack.c.l.b16 %v580
    %v859 = vunpack.c.h.b16 %v580
    %v860 = vunpack.c.l.b16 %v581
    %v861 = vunpack.c.h.b16 %v581
    %v862 = vunpack.c.l.b16 %v582
    %v863 = vunpack.c.h.b16 %v582
    %v864 = vunpack.c.l.b16 %v583
    %v865 = vunpack.c.h.b16 %v583
    %v866 = vunpack.c.l.b16 %v584
    %v867 = vunpack.c.h.b16 %v584
    %v868 = vunpack.c.l.b16 %v585
    %v869 = vunpack.c.h.b16 %v585
    %v870 = vunpack.c.l.b16 %v586
    %v871 = vunpack.c.h.b16 %v586
    %v872 = vunpack.c.l.b16 %v587
    %v873 = vunpack.c.h.b16 %v587
    %v874 = vunpack.c.l.b16 %v588
    %v875 = vunpack.c.h.b16 %v588
    %v876 = vunpack.c.l.b16 %v589
    %v877 = vunpack.c.h.b16 %v589
    %v878 = vunpack.c.l.b16 %v590
    %v879 = vunpack.c.h.b16 %v590
    %v880 = vunpack.c.l.b16 %v591
    %v881 = vunpack.c.h.b16 %v591
    %v882 = vunpack.c.l.b16 %v592
    %v883 = vunpack.c.h.b16 %v592
    %v884 = vunpack.c.l.b16 %v593
    %v885 = vunpack.c.h.b16 %v593
    %v886 = vunpack.c.l.b16 %v594
    %v887 = vunpack.c.h.b16 %v594
    %v888 = vunpack.c.l.b16 %v595
    %v889 = vunpack.c.h.b16 %v595
    %v890 = vunpack.c.l.b16 %v596
    %v891 = vunpack.c.h.b16 %v596
    %v892 = vunpack.c.l.b16 %v597
    %v893 = vunpack.c.h.b16 %v597
    %v894 = vunpack.c.l.b16 %v598
    %v895 = vunpack.c.h.b16 %v598
    %v896 = vunpack.c.l.b16 %v599
    %v897 = vunpack.c.h.b16 %v599
    %v898 = vunpack.c.l.b16 %v600
    %v899 = vunpack.c.h.b16 %v600
    %v900 = vunpack.c.l.b16 %v601
    %v901 = vunpack.c.h.b16 %v601
    %v902 = vunpack.c.l.b16 %v602
    %v903 = vunpack.c.h.b16 %v602
    %v904 = vunpack.c.l.b16 %v603
    %v905 = vunpack.c.h.b16 %v603
    %v906 = vunpack.c.l.b16 %v604
    %v907 = vunpack.c.h.b16 %v604
    %v908 = vunpack.c.l.b16 %v605
    %v909 = vunpack.c.h.b16 %v605
    %v910 = vunpack.c.l.b16 %v606
    %v911 = vunpack.c.h.b16 %v606
    %v912 = vunpack.c.l.b16 %v607
    %v913 = vunpack.c.h.b16 %v607
    %v914 = vunpack.c.l.b16 %v608
    %v915 = vunpack.c.h.b16 %v608
    %v916 = vunpack.c.l.b16 %v609
    %v917 = vunpack.c.h.b16 %v609
    %v918 = vunpack.c.l.b16 %v610
    %v919 = vunpack.c.h.b16 %v610
    %v920 = vunpack.c.l.b16 %v611
    %v921 = vunpack.c.h.b16 %v611
    %v922 = vunpack.c.l.b16 %v612
    %v923 = vunpack.c.h.b16 %v612
    %v924 = vunpack.c.l.b16 %v613
    %v925 = vunpack.c.h.b16 %v613
    %v926 = vunpack.c.l.b16 %v614
    %v927 = vunpack.c.h.b16 %v614
    %v928 = vunpack.c.l.b16 %v615
    %v929 = vunpack.c.h.b16 %v615
    %v930 = vunpack.c.l.b16 %v616
    %v931 = vunpack.c.h.b16 %v616
    %v932 = vunpack.c.l.b16 %v617
    %v933 = vunpack.c.h.b16 %v617
    %v934 = vunpack.c.l.b16 %v618
    %v935 = vunpack.c.h.b16 %v618
    %v936 = vunpack.c.l.b16 %v619
    %v937 = vunpack.c.h.b16 %v619
    %v938 = vunpack.c.l.b16 %v620
    %v939 = vunpack.c.h.b16 %v620
    %v940 = vunpack.c.l.b16 %v621
    %v941 = vunpack.c.h.b16 %v621
    %v942 = vunpack.c.l.b16 %v622
    %v943 = vunpack.c.h.b16 %v622
    %v944 = vunpack.c.l.b16 %v623
    %v945 = vunpack.c.h.b16 %v623
    %v946 = vunpack.c.l.b16 %v624
    %v947 = vunpack.c.h.b16 %v624
    %v948 = vunpack.c.l.b16 %v625
    %v949 = vunpack.c.h.b16 %v625
    %v950 = vunpack.c.l.b16 %v626
    %v951 = vunpack.c.h.b16 %v626
    %v952 = vunpack.c.l.b16 %v627
    %v953 = vunpack.c.h.b16 %v627
    %v954 = vunpack.c.l.b16 %v628
    %v955 = vunpack.c.h.b16 %v628
    %v956 = vunpack.c.l.b16 %v629
    %v957 = vunpack.c.h.b16 %v629
    %v958 = vunpack.c.l.b16 %v630
    %v959 = vunpack.c.h.b16 %v630
    %v960 = vunpack.c.l.b16 %v631
    %v961 = vunpack.c.h.b16 %v631
    %v962 = vunpack.c.l.b16 %v632
    %v963 = vunpack.c.h.b16 %v632
    %v964 = vunpack.c.l.b16 %v633
    %v965 = vunpack.c.h.b16 %v633
    %v966 = vunpack.c.l.b16 %v634
    %v967 = vunpack.c.h.b16 %v634
    %v968 = vunpack.c.l.b16 %v635
    %v969 = vunpack.c.h.b16 %v635
    %v970 = vunpack.c.l.b16 %v636
    %v971 = vunpack.c.h.b16 %v636
    %v972 = vunpack.c.l.b16 %v637
    %v973 = vunpack.c.h.b16 %v637
    %v974 = vunpack.c.l.b16 %v638
    %v975 = vunpack.c.h.b16 %v638
    %v976 = vunpack.c.l.b16 %v639
    %v977 = vunpack.c.h.b16 %v639
    %v978 = vunpack.c.l.b16 %v640
    %v979 = vunpack.c.h.b16 %v640
    %v980 = vunpack.c.l.b16 %v641
    %v981 = vunpack.c.h.b16 %v641
    %v982 = vunpack.c.l.b16 %v642
    %v983 = vunpack.c.h.b16 %v642
    %v984 = vunpack.c.l.b16 %v643
    %v985 = vunpack.c.h.b16 %v643
    %v986 = vunpack.c.l.b16 %v644
    %v987 = vunpack.c.h.b16 %v644
    %v988 = vunpack.c.l.b16 %v645
    %v989 = vunpack.c.h.b16 %v645
    %v990 = vunpack.c.l.b16 %v646
    %v991 = vunpack.c.h.b16 %v646
    %v992 = vunpack.c.l.b16 %v647
    %v993 = vunpack.c.h.b16 %v647
    %v994 = vunpack.c.l.b16 %v648
    %v995 = vunpack.c.h.b16 %v648
    %v996 = vunpack.c.l.b16 %v649
    %v997 = vunpack.c.h.b16 %v649
    %v998 = vunpack.c.l.b16 %v650
    %v999 = vunpack.c.h.b16 %v650
    %v1000 = vunpack.c.l.b16 %v651
    %v1001 = vunpack.c.h.b16 %v651
    %v1002 = vunpack.c.l.b16 %v652
    %v1003 = vunpack.c.h.b16 %v652
    %v1004 = vunpack.c.l.b16 %v653
    %v1005 = vunpack.c.h.b16 %v653
    %v1006 = vunpack.c.l.b16 %v654
    %v1007 = vunpack.c.h.b16 %v654
    %v1008 = vunpack.c.l.b16 %v655
    %v1009 = vunpack.c.h.b16 %v655
    %v1010 = vunpack.c.l.b16 %v656
    %v1011 = vunpack.c.h.b16 %v656
    %v1012 = vunpack.c.l.b16 %v657
    %v1013 = vunpack.c.h.b16 %v657
    %v1014 = vunpack.c.l.b16 %v658
    %v1015 = vunpack.c.h.b16 %v658
    %v1016 = vunpack.c.l.b16 %v659
    %v1017 = vunpack.c.h.b16 %v659
    %v1018 = vunpack.c.l.b16 %v660
    %v1019 = vunpack.c.h.b16 %v660
    %v1020 = vunpack.c.l.b16 %v661
    %v1021 = vunpack.c.h.b16 %v661
    %v1022 = vunpack.c.l.b16 %v662
    %v1023 = vunpack.c.h.b16 %v662
    %v1024 = vunpack.c.l.b16 %v663
    %v1025 = vunpack.c.h.b16 %v663
    %v1026 = vunpack.c.l.b16 %v664
    %v1027 = vunpack.c.h.b16 %v664
    %v1028 = vunpack.c.l.b16 %v665
    %v1029 = vunpack.c.h.b16 %v665
    %v1030 = vunpack.c.l.b16 %v666
    %v1031 = vunpack.c.h.b16 %v666
    %v1032 = vunpack.c.l.b16 %v667
    %v1033 = vunpack.c.h.b16 %v667
    %v1034 = vunpack.c.l.b16 %v668
    %v1035 = vunpack.c.h.b16 %v668
    %v1036 = vunpack.c.l.b16 %v669
    %v1037 = vunpack.c.h.b16 %v669
    %v1038 = vunpack.c.l.b16 %v670
    %v1039 = vunpack.c.h.b16 %v670
    %v1040 = vunpack.c.l.b16 %v671
    %v1041 = vunpack.c.h.b16 %v671
    %v1042 = vunpack.c.l.b16 %v672
    %v1043 = vunpack.c.h.b16 %v672
    %v1044 = vunpack.c.l.b16 %v673
    %v1045 = vunpack.c.h.b16 %v673
    %v1046 = vunpack.c.l.b16 %v674
    %v1047 = vunpack.c.h.b16 %v674
    %v1048 = vunpack.c.l.b16 %v675
    %v1049 = vunpack.c.h.b16 %v675
    %v1050 = vunpack.c.l.b16 %v676
    %v1051 = vunpack.c.h.b16 %v676
    %v1052 = vunpack.c.l.b16 %v677
    %v1053 = vunpack.c.h.b16 %v677
    %v1054 = vunpack.c.l.b16 %v678
    %v1055 = vunpack.c.h.b16 %v678
    %v1056 = vunpack.c.l.b16 %v679
    %v1057 = vunpack.c.h.b16 %v679
    %v1058 = vunpack.c.l.b16 %v680
    %v1059 = vunpack.c.h.b16 %v680
    %v1060 = vunpack.c.l.b16 %v681
    %v1061 = vunpack.c.h.b16 %v681
    %v1062 = vunpack.c.l.b16 %v682
    %v1063 = vunpack.c.h.b16 %v682
    %v1064 = vunpack.c.l.b16 %v683
    %v1065 = vunpack.c.h.b16 %v683
    %v1066 = vunpack.c.l.b16 %v684
    %v1067 = vunpack.c.h.b16 %v684
    %v1068 = vunpack.c.l.b16 %v685
    %v1069 = vunpack.c.h.b16 %v685
    %v1070 = vunpack.c.l.b16 %v686
    %v1071 = vunpack.c.h.b16 %v686
    %v1072 = vunpack.c.l.b16 %v687
    %v1073 = vunpack.c.h.b16 %v687
    %v1074 = vunpack.c.l.b16 %v688
    %v1075 = vunpack.c.h.b16 %v688
    %v1076 = vunpack.c.l.b16 %v689
    %v1077 = vunpack.c.h.b16 %v689
    %v1078 = vunpack.c.l.b16 %v690
    %v1079 = vunpack.c.h.b16 %v690
    %v1080 = vunpack.c.l.b16 %v691
    %v1081 = vunpack.c.h.b16 %v691
    %v1082 = vunpack.c.l.b16 %v692
    %v1083 = vunpack.c.h.b16 %v692
    %v1084 = vunpack.c.l.b16 %v693
    %v1085 = vunpack.c.h.b16 %v693
    %v1086 = vunpack.c.l.b16 %v694
    %v1087 = vunpack.c.h.b16 %v694
    %v1088 = vunpack.c.l.b16 %v695
    %v1089 = vunpack.c.h.b16 %v695
    %v1090 = vunpack.c.l.b16 %v696
    %v1091 = vunpack.c.h.b16 %v696
    %v1092 = vunpack.c.l.b16 %v697
    %v1093 = vunpack.c.h.b16 %v697
    %v1094 = vunpack.c.l.b16 %v698
    %v1095 = vunpack.c.h.b16 %v698
    %v1096 = vunpack.c.l.b16 %v699
    %v1097 = vunpack.c.h.b16 %v699
    %v1098 = vunpack.c.l.b16 %v700
    %v1099 = vunpack.c.h.b16 %v700
    %v1100 = vunpack.c.l.b16 %v701
    %v1101 = vunpack.c.h.b16 %v701
    %v1102 = vunpack.c.l.b16 %v702
    %v1103 = vunpack.c.h.b16 %v702
    %v1104 = vunpack.c.l.b16 %v703
    %v1105 = vunpack.c.h.b16 %v703
    %v1106 = vunpack.c.l.b16 %v704
    %v1107 = vunpack.c.h.b16 %v704
    %v1108 = vunpack.c.l.b16 %v705
    %v1109 = vunpack.c.h.b16 %v705
    %v1110 = vunpack.c.l.b16 %v706
    %v1111 = vunpack.c.h.b16 %v706
    %v1112 = vunpack.c.l.b16 %v707
    %v1113 = vunpack.c.h.b16 %v707
    %v1114 = vpack.c.b16 %v862, %v858
    %v1115 = vpack.c.b16 %v863, %v859
    %v1116 = vpack.c.b16 %v864, %v860
    %v1117 = vpack.c.b16 %v865, %v861
    %v1118 = vpack.c.b16 %v870, %v866
    %v1119 = vpack.c.b16 %v871, %v867
    %v1120 = vpack.c.b16 %v872, %v868
    %v1121 = vpack.c.b16 %v873, %v869
    %v1122 = vpack.c.b16 %v878, %v874
    %v1123 = vpack.c.b16 %v879, %v875
    %v1124 = vpack.c.b16 %v880, %v876
    %v1125 = vpack.c.b16 %v881, %v877
    %v1126 = vpack.c.b16 %v886, %v882
    %v1127 = vpack.c.b16 %v887, %v883
    %v1128 = vpack.c.b16 %v888, %v884
    %v1129 = vpack.c.b16 %v889, %v885
    %v1130 = vpack.c.b16 %v894, %v890
    %v1131 = vpack.c.b16 %v895, %v891
    %v1132 = vpack.c.b16 %v896, %v892
    %v1133 = vpack.c.b16 %v897, %v893
    %v1134 = vpack.c.b16 %v902, %v898
    %v1135 = vpack.c.b16 %v903, %v899
    %v1136 = vpack.c.b16 %v904, %v900
    %v1137 = vpack.c.b16 %v905, %v901
    %v1138 = vpack.c.b16 %v910, %v906
    %v1139 = vpack.c.b16 %v911, %v907
    %v1140 = vpack.c.b16 %v912, %v908
    %v1141 = vpack.c.b16 %v913, %v909
    %v1142 = vpack.c.b16 %v918, %v914
    %v1143 = vpack.c.b16 %v919, %v915
    %v1144 = vpack.c.b16 %v920, %v916
    %v1145 = vpack.c.b16 %v921, %v917
    %v1146 = vpack.c.b16 %v926, %v922
    %v1147 = vpack.c.b16 %v927, %v923
    %v1148 = vpack.c.b16 %v928, %v924
    %v1149 = vpack.c.b16 %v929, %v925
    %v1150 = vpack.c.b16 %v934, %v930
    %v1151 = vpack.c.b16 %v935, %v931
    %v1152 = vpack.c.b16 %v936, %v932
    %v1153 = vpack.c.b16 %v937, %v933
    %v1154 = vpack.c.b16 %v942, %v938
    %v1155 = vpack.c.b16 %v943, %v939
    %v1156 = vpack.c.b16 %v944, %v940
    %v1157 = vpack.c.b16 %v945, %v941
    %v1158 = vpack.c.b16 %v950, %v946
    %v1159 = vpack.c.b16 %v951, %v947
    %v1160 = vpack.c.b16 %v952, %v948
    %v1161 = vpack.c.b16 %v953, %v949
    %v1162 = vpack.c.b16 %v958, %v954
    %v1163 = vpack.c.b16 %v959, %v955
    %v1164 = vpack.c.b16 %v960, %v956
    %v1165 = vpack.c.b16 %v961, %v957
    %v1166 = vpack.c.b16 %v966, %v962
    %v1167 = vpack.c.b16 %v967, %v963
    %v1168 = vpack.c.b16 %v968, %v964
    %v1169 = vpack.c.b16 %v969, %v965
    %v1170 = vpack.c.b16 %v974, %v970
    %v1171 = vpack.c.b16 %v975, %v971
    %v1172 = vpack.c.b16 %v976, %v972
    %v1173 = vpack.c.b16 %v977, %v973
    %v1174 = vpack.c.b16 %v982, %v978
    %v1175 = vpack.c.b16 %v983, %v979
    %v1176 = vpack.c.b16 %v984, %v980
    %v1177 = vpack.c.b16 %v985, %v981
    %v1178 = vpack.c.b16 %v990, %v986
    %v1179 = vpack.c.b16 %v991, %v987
    %v1180 = vpack.c.b16 %v992, %v988
    %v1181 = vpack.c.b16 %v993, %v989
    %v1182 = vpack.c.b16 %v998, %v994
    %v1183 = vpack.c.b16 %v999, %v995
    %v1184 = vpack.c.b16 %v1000, %v996
    %v1185 = vpack.c.b16 %v1001, %v997
    %v1186 = vpack.c.b16 %v1006, %v1002
    %v1187 = vpack.c.b16 %v1007, %v1003
    %v1188 = vpack.c.b16 %v1008, %v1004
    %v1189 = vpack.c.b16 %v1009, %v1005
    %v1190 = vpack.c.b16 %v1014, %v1010
    %v1191 = vpack.c.b16 %v1015, %v1011
    %v1192 = vpack.c.b16 %v1016, %v1012
    %v1193 = vpack.c.b16 %v1017, %v1013
    %v1194 = vpack.c.b16 %v1022, %v1018
    %v1195 = vpack.c.b16 %v1023, %v1019
    %v1196 = vpack.c.b16 %v1024, %v1020
    %v1197 = vpack.c.b16 %v1025, %v1021
    %v1198 = vpack.c.b16 %v1030, %v1026
    %v1199 = vpack.c.b16 %v1031, %v1027
    %v1200 = vpack.c.b16 %v1032, %v1028
    %v1201 = vpack.c.b16 %v1033, %v1029
    %v1202 = vpack.c.b16 %v1038, %v1034
    %v1203 = vpack.c.b16 %v1039, %v1035
    %v1204 = vpack.c.b16 %v1040, %v1036
    %v1205 = vpack.c.b16 %v1041, %v1037
    %v1206 = vpack.c.b16 %v1046, %v1042
    %v1207 = vpack.c.b16 %v1047, %v1043
    %v1208 = vpack.c.b16 %v1048, %v1044
    %v1209 = vpack.c.b16 %v1049, %v1045
    %v1210 = vpack.c.b16 %v1054, %v1050
    %v1211 = vpack.c.b16 %v1055, %v1051
    %v1212 = vpack.c.b16 %v1056, %v1052
    %v1213 = vpack.c.b16 %v1057, %v1053
    %v1214 = vpack.c.b16 %v1062, %v1058
    %v1215 = vpack.c.b16 %v1063, %v1059
    %v1216 = vpack.c.b16 %v1064, %v1060
    %v1217 = vpack.c.b16 %v1065, %v1061
    %v1218 = vpack.c.b16 %v1070, %v1066
    %v1219 = vpack.c.b16 %v1071, %v1067
    %v1220 = vpack.c.b16 %v1072, %v1068
    %v1221 = vpack.c.b16 %v1073, %v1069
    %v1222 = vpack.c.b16 %v1078, %v1074
    %v1223 = vpack.c.b16 %v1079, %v1075
    %v1224 = vpack.c.b16 %v1080, %v1076
    %v1225 = vpack.c.b16 %v1081, %v1077
    %v1226 = vpack.c.b16 %v1086, %v1082
    %v1227 = vpack.c.b16 %v1087, %v1083
    %v1228 = vpack.c.b16 %v1088, %v1084
    %v1229 = vpack.c.b16 %v1089, %v1085
    %v1230 = vpack.c.b16 %v1094, %v1090
    %v1231 = vpack.c.b16 %v1095, %v1091
    %v1232 = vpack.c.b16 %v1096, %v1092
    %v1233 = vpack.c.b16 %v1097, %v1093
    %v1234 = vpack.c.b16 %v1102, %v1098
    %v1235 = vpack.c.b16 %v1103, %v1099
    %v1236 = vpack.c.b16 %v1104, %v1100
    %v1237 = vpack.c.b16 %v1105, %v1101
    %v1238 = vpack.c.b16 %v1110, %v1106
    %v1239 = vpack.c.b16 %v1111, %v1107
    %v1240 = vpack.c.b16 %v1112, %v1108
    %v1241 = vpack.c.b16 %v1113, %v1109
    %1370 = vmatprep.subr.bf16.mxu0 %v1115
    %1371 = vmatpush1.bf16.msra.mxu0 %v1114
    %1372 = vmatprep.subr.bf16.mxu0 %v1119
    %1373 = vmatpush1.bf16.msra.mxu0 %v1118
    %1374 = vmatprep.subr.bf16.mxu0 %v1123
    %1375 = vmatpush1.bf16.msra.mxu0 %v1122
    %1376 = vmatprep.subr.bf16.mxu0 %v1127
    %1377 = vmatpush1.bf16.msra.mxu0 %v1126
    %1378 = vmatprep.subr.bf16.mxu0 %v1131
    %1379 = vmatpush1.bf16.msra.mxu0 %v1130
    %1380 = vmatprep.subr.bf16.mxu0 %v1135
    %1381 = vmatpush1.bf16.msra.mxu0 %v1134
    %1382 = vmatprep.subr.bf16.mxu0 %v1139
    %1383 = vmatpush1.bf16.msra.mxu0 %v1138
    %1384 = vmatprep.subr.bf16.mxu0 %v1143
    %1385 = vmatpush1.bf16.msra.mxu0 %v1142
    %1386 = vmatprep.subr.bf16.mxu0 %v1147
    %1387 = vmatpush1.bf16.msra.mxu0 %v1146
    %1388 = vmatprep.subr.bf16.mxu0 %v1151
    %1389 = vmatpush1.bf16.msra.mxu0 %v1150
    %1390 = vmatprep.subr.bf16.mxu0 %v1155
    %1391 = vmatpush1.bf16.msra.mxu0 %v1154
    %1392 = vmatprep.subr.bf16.mxu0 %v1159
    %1393 = vmatpush1.bf16.msra.mxu0 %v1158
    %1394 = vmatprep.subr.bf16.mxu0 %v1163
    %1395 = vmatpush1.bf16.msra.mxu0 %v1162
    %1396 = vmatprep.subr.bf16.mxu0 %v1167
    %1397 = vmatpush1.bf16.msra.mxu0 %v1166
    %1398 = vmatprep.subr.bf16.mxu0 %v1171
    %1399 = vmatpush1.bf16.msra.mxu0 %v1170
    %1400 = vmatprep.subr.bf16.mxu0 %v1175
    %1401 = vmatpush1.bf16.msra.mxu0 %v1174
    %1402 = vmatprep.mubr.bf16.mxu0 %v577
    %1403 = vmatmul.mubr.bf16.gmra.mrb[0].mxu0 %v576
    %v1404 = vpop.f32.mrb[0].mxu0
    %v1405 = vadd.f32 %v713, %v1404
    %v1406 = vpop.f32.mrb[0].mxu0
    %v1407 = vadd.f32 %v717, %v1406
    %v1408 = vpop.f32.mrb[0].mxu0
    %v1409 = vpop.f32.mrb[0].mxu0
    %1410 = vdwg.mxu0
    %1411 = vmatprep.subr.bf16.mxu0 %v1179
    %1412 = vmatpush1.bf16.msra.mxu0 %v1178
    %1413 = vmatprep.subr.bf16.mxu0 %v1183
    %1414 = vmatpush1.bf16.msra.mxu0 %v1182
    %1415 = vmatprep.subr.bf16.mxu0 %v1187
    %1416 = vmatpush1.bf16.msra.mxu0 %v1186
    %1417 = vmatprep.subr.bf16.mxu0 %v1191
    %1418 = vmatpush1.bf16.msra.mxu0 %v1190
    %1419 = vmatprep.subr.bf16.mxu0 %v1195
    %1420 = vmatpush1.bf16.msra.mxu0 %v1194
    %1421 = vmatprep.subr.bf16.mxu0 %v1199
    %1422 = vmatpush1.bf16.msra.mxu0 %v1198
    %1423 = vmatprep.subr.bf16.mxu0 %v1203
    %1424 = vmatpush1.bf16.msra.mxu0 %v1202
    %1425 = vmatprep.subr.bf16.mxu0 %v1207
    %1426 = vmatpush1.bf16.msra.mxu0 %v1206
    %1427 = vmatprep.subr.bf16.mxu0 %v1211
    %1428 = vmatpush1.bf16.msra.mxu0 %v1210
    %1429 = vmatprep.subr.bf16.mxu0 %v1215
    %1430 = vmatpush1.bf16.msra.mxu0 %v1214
    %1431 = vmatprep.subr.bf16.mxu0 %v1219
    %1432 = vmatpush1.bf16.msra.mxu0 %v1218
    %1433 = vmatprep.subr.bf16.mxu0 %v1223
    %1434 = vmatpush1.bf16.msra.mxu0 %v1222
    %1435 = vmatprep.subr.bf16.mxu0 %v1227
    %1436 = vmatpush1.bf16.msra.mxu0 %v1226
    %1437 = vmatprep.subr.bf16.mxu0 %v1231
    %1438 = vmatpush1.bf16.msra.mxu0 %v1230
    %1439 = vmatprep.subr.bf16.mxu0 %v1235
    %1440 = vmatpush1.bf16.msra.mxu0 %v1234
    %1441 = vmatprep.subr.bf16.mxu0 %v1239
    %1442 = vmatpush1.bf16.msra.mxu0 %v1238
    %1443 = vmatprep.mubr.bf16.mxu0 %v579
    %1444 = vmatmul.mubr.bf16.gmra.mrb[0].mxu0 %v578
    %v1445 = vpop.f32.mrb[0].mxu0
    %v1446 = vadd.f32 %v1405, %v1445
    %v1447 = vpop.f32.mrb[0].mxu0
    %v1448 = vadd.f32 %v1407, %v1447
    %v1449 = vpop.f32.mrb[0].mxu0
    %v1450 = vpop.f32.mrb[0].mxu0
    %1451 = vdwg.mxu0
    %1452 = vmatprep.subr.bf16.mxu0 %v1117
    %1453 = vmatpush1.bf16.msra.mxu0 %v1116
    %1454 = vmatprep.subr.bf16.mxu0 %v1121
    %1455 = vmatpush1.bf16.msra.mxu0 %v1120
    %1456 = vmatprep.subr.bf16.mxu0 %v1125
    %1457 = vmatpush1.bf16.msra.mxu0 %v1124
    %1458 = vmatprep.subr.bf16.mxu0 %v1129
    %1459 = vmatpush1.bf16.msra.mxu0 %v1128
    %1460 = vmatprep.subr.bf16.mxu0 %v1133
    %1461 = vmatpush1.bf16.msra.mxu0 %v1132
    %1462 = vmatprep.subr.bf16.mxu0 %v1137
    %1463 = vmatpush1.bf16.msra.mxu0 %v1136
    %1464 = vmatprep.subr.bf16.mxu0 %v1141
    %1465 = vmatpush1.bf16.msra.mxu0 %v1140
    %1466 = vmatprep.subr.bf16.mxu0 %v1145
    %1467 = vmatpush1.bf16.msra.mxu0 %v1144
    %1468 = vmatprep.subr.bf16.mxu0 %v1149
    %1469 = vmatpush1.bf16.msra.mxu0 %v1148
    %1470 = vmatprep.subr.bf16.mxu0 %v1153
    %1471 = vmatpush1.bf16.msra.mxu0 %v1152
    %1472 = vmatprep.subr.bf16.mxu0 %v1157
    %1473 = vmatpush1.bf16.msra.mxu0 %v1156
    %1474 = vmatprep.subr.bf16.mxu0 %v1161
    %1475 = vmatpush1.bf16.msra.mxu0 %v1160
    %1476 = vmatprep.subr.bf16.mxu0 %v1165
    %1477 = vmatpush1.bf16.msra.mxu0 %v1164
    %1478 = vmatprep.subr.bf16.mxu0 %v1169
    %1479 = vmatpush1.bf16.msra.mxu0 %v1168
    %1480 = vmatprep.subr.bf16.mxu0 %v1173
    %1481 = vmatpush1.bf16.msra.mxu0 %v1172
    %1482 = vmatprep.subr.bf16.mxu0 %v1177
    %1483 = vmatpush1.bf16.msra.mxu0 %v1176
    %1484 = vmatprep.mubr.bf16.mxu0 %v577
    %1485 = vmatmul.mubr.bf16.gmra.mrb[0].mxu0 %v576
    %v1486 = vpop.f32.mrb[0].mxu0
    %v1487 = vadd.f32 %v721, %v1486
    %v1488 = vpop.f32.mrb[0].mxu0
    %v1489 = vadd.f32 %v725, %v1488
    %v1490 = vpop.f32.mrb[0].mxu0
    %v1491 = vpop.f32.mrb[0].mxu0
    %1492 = vdwg.mxu0
    %1493 = vmatprep.subr.bf16.mxu0 %v1181
    %1494 = vmatpush1.bf16.msra.mxu0 %v1180
    %1495 = vmatprep.subr.bf16.mxu0 %v1185
    %1496 = vmatpush1.bf16.msra.mxu0 %v1184
    %1497 = vmatprep.subr.bf16.mxu0 %v1189
    %1498 = vmatpush1.bf16.msra.mxu0 %v1188
    %1499 = vmatprep.subr.bf16.mxu0 %v1193
    %1500 = vmatpush1.bf16.msra.mxu0 %v1192
    %1501 = vmatprep.subr.bf16.mxu0 %v1197
    %1502 = vmatpush1.bf16.msra.mxu0 %v1196
    %1503 = vmatprep.subr.bf16.mxu0 %v1201
    %1504 = vmatpush1.bf16.msra.mxu0 %v1200
    %1505 = vmatprep.subr.bf16.mxu0 %v1205
    %1506 = vmatpush1.bf16.msra.mxu0 %v1204
    %1507 = vmatprep.subr.bf16.mxu0 %v1209
    %1508 = vmatpush1.bf16.msra.mxu0 %v1208
    %1509 = vmatprep.subr.bf16.mxu0 %v1213
    %1510 = vmatpush1.bf16.msra.mxu0 %v1212
    %1511 = vmatprep.subr.bf16.mxu0 %v1217
    %1512 = vmatpush1.bf16.msra.mxu0 %v1216
    %1513 = vmatprep.subr.bf16.mxu0 %v1221
    %1514 = vmatpush1.bf16.msra.mxu0 %v1220
    %1515 = vmatprep.subr.bf16.mxu0 %v1225
    %1516 = vmatpush1.bf16.msra.mxu0 %v1224
    %1517 = vmatprep.subr.bf16.mxu0 %v1229
    %1518 = vmatpush1.bf16.msra.mxu0 %v1228
    %1519 = vmatprep.subr.bf16.mxu0 %v1233
    %1520 = vmatpush1.bf16.msra.mxu0 %v1232
    %1521 = vmatprep.subr.bf16.mxu0 %v1237
    %1522 = vmatpush1.bf16.msra.mxu0 %v1236
    %1523 = vmatprep.subr.bf16.mxu0 %v1241
    %1524 = vmatpush1.bf16.msra.mxu0 %v1240
    %1525 = vmatprep.mubr.bf16.mxu0 %v579
    %1526 = vmatmul.mubr.bf16.gmra.mrb[0].mxu0 %v578
    %v1527 = vpop.f32.mrb[0].mxu0
    %v1528 = vadd.f32 %v1487, %v1527
    %v1529 = vpop.f32.mrb[0].mxu0
    %v1530 = vadd.f32 %v1489, %v1529
    %v1531 = vpop.f32.mrb[0].mxu0
    %v1532 = vpop.f32.mrb[0].mxu0
    %1533 = vdwg.mxu0
    %v1534 = vmax.f32 %v1446, 0.0
    %v1535 = vmax.f32 %v1448, 0.0
    %v1536 = vmax.f32 %v1528, 0.0
    %v1537 = vmax.f32 %v1530, 0.0
    %v1538 = vld [vmem:[#allocation8] sm:$0xff]
    %v1539 = vld [vmem:[#allocation8 + $0x8] sm:$0xff]
    %v1540 = vld [vmem:[#allocation8 + $0x10] sm:$0xff]
    %v1541 = vld [vmem:[#allocation8 + $0x18] sm:$0xff]
    %v1542 = vld [vmem:[#allocation8 + $0x20] sm:$0xff]
    %v1543 = vld [vmem:[#allocation8 + $0x28] sm:$0xff]
    %v1544 = vld [vmem:[#allocation8 + $0x30] sm:$0xff]
    %v1545 = vld [vmem:[#allocation8 + $0x38] sm:$0xff]
    %v1546 = vld [vmem:[#allocation8 + $0x40] sm:$0xff]
    %v1547 = vld [vmem:[#allocation8 + $0x48] sm:$0xff]
    %v1548 = vld [vmem:[#allocation8 + $0x50] sm:$0xff]
    %v1549 = vld [vmem:[#allocation8 + $0x58] sm:$0xff]
    %v1550 = vld [vmem:[#allocation8 + $0x60] sm:$0xff]
    %v1551 = vld [vmem:[#allocation8 + $0x68] sm:$0xff]
    %v1552 = vld [vmem:[#allocation8 + $0x70] sm:$0xff]
    %v1553 = vld [vmem:[#allocation8 + $0x78] sm:$0xff]
    %v1554 = vld [vmem:[#allocation8 + $0x80] sm:$0xff]
    %v1555 = vld [vmem:[#allocation8 + $0x88] sm:$0xff]
    %v1556 = vld [vmem:[#allocation8 + $0x90] sm:$0xff]
    %v1557 = vld [vmem:[#allocation8 + $0x98] sm:$0xff]
    %v1558 = vld [vmem:[#allocation8 + $0xa0] sm:$0xff]
    %v1559 = vld [vmem:[#allocation8 + $0xa8] sm:$0xff]
    %v1560 = vld [vmem:[#allocation8 + $0xb0] sm:$0xff]
    %v1561 = vld [vmem:[#allocation8 + $0xb8] sm:$0xff]
    %v1562 = vld [vmem:[#allocation8 + $0xc0] sm:$0xff]
    %v1563 = vld [vmem:[#allocation8 + $0xc8] sm:$0xff]
    %v1564 = vld [vmem:[#allocation8 + $0xd0] sm:$0xff]
    %v1565 = vld [vmem:[#allocation8 + $0xd8] sm:$0xff]
    %v1566 = vld [vmem:[#allocation8 + $0xe0] sm:$0xff]
    %v1567 = vld [vmem:[#allocation8 + $0xe8] sm:$0xff]
    %v1568 = vld [vmem:[#allocation8 + $0xf0] sm:$0xff]
    %v1569 = vld [vmem:[#allocation8 + $0xf8] sm:$0xff]
    %v1570 = vld [vmem:[#allocation8 + $0x100] sm:$0xff]
    %v1571 = vld [vmem:[#allocation8 + $0x108] sm:$0xff]
    %v1572 = vld [vmem:[#allocation8 + $0x110] sm:$0xff]
    %v1573 = vld [vmem:[#allocation8 + $0x118] sm:$0xff]
    %v1574 = vld [vmem:[#allocation8 + $0x120] sm:$0xff]
    %v1575 = vld [vmem:[#allocation8 + $0x128] sm:$0xff]
    %v1576 = vld [vmem:[#allocation8 + $0x130] sm:$0xff]
    %v1577 = vld [vmem:[#allocation8 + $0x138] sm:$0xff]
    %v1578 = vld [vmem:[#allocation8 + $0x140] sm:$0xff]
    %v1579 = vld [vmem:[#allocation8 + $0x148] sm:$0xff]
    %v1580 = vld [vmem:[#allocation8 + $0x150] sm:$0xff]
    %v1581 = vld [vmem:[#allocation8 + $0x158] sm:$0xff]
    %v1582 = vld [vmem:[#allocation8 + $0x160] sm:$0xff]
    %v1583 = vld [vmem:[#allocation8 + $0x168] sm:$0xff]
    %v1584 = vld [vmem:[#allocation8 + $0x170] sm:$0xff]
    %v1585 = vld [vmem:[#allocation8 + $0x178] sm:$0xff]
    %v1586 = vld [vmem:[#allocation8 + $0x180] sm:$0xff]
    %v1587 = vld [vmem:[#allocation8 + $0x188] sm:$0xff]
    %v1588 = vld [vmem:[#allocation8 + $0x190] sm:$0xff]
    %v1589 = vld [vmem:[#allocation8 + $0x198] sm:$0xff]
    %v1590 = vld [vmem:[#allocation8 + $0x1a0] sm:$0xff]
    %v1591 = vld [vmem:[#allocation8 + $0x1a8] sm:$0xff]
    %v1592 = vld [vmem:[#allocation8 + $0x1b0] sm:$0xff]
    %v1593 = vld [vmem:[#allocation8 + $0x1b8] sm:$0xff]
    %v1594 = vld [vmem:[#allocation8 + $0x1c0] sm:$0xff]
    %v1595 = vld [vmem:[#allocation8 + $0x1c8] sm:$0xff]
    %v1596 = vld [vmem:[#allocation8 + $0x1d0] sm:$0xff]
    %v1597 = vld [vmem:[#allocation8 + $0x1d8] sm:$0xff]
    %v1598 = vld [vmem:[#allocation8 + $0x1e0] sm:$0xff]
    %v1599 = vld [vmem:[#allocation8 + $0x1e8] sm:$0xff]
    %v1600 = vld [vmem:[#allocation8 + $0x1f0] sm:$0xff]
    %v1601 = vld [vmem:[#allocation8 + $0x1f8] sm:$0xff]
    %v1602 = vld [vmem:[%s6] sm:$0x1]
    %v1604 = vlaneseq
    %v1605 = vshrl.u32 %v1604, 7
    %v1606 = vsub.s32 0, %v1605
    %v1607 = vrot.slane %v1602, %v1606
    %1609 = vmatprep.subr.mxu0 0.0
    %1610 = vmatpush1.msra.mxu0 %v1538
    %1611 = vmatprep.subr.mxu0 0.0
    %1612 = vmatpush1.msra.mxu0 %v1539
    %1613 = vmatprep.subr.mxu0 0.0
    %1614 = vmatpush1.msra.mxu0 %v1540
    %1615 = vmatprep.subr.mxu0 0.0
    %1616 = vmatpush1.msra.mxu0 %v1541
    %1617 = vmatprep.subr.mxu0 0.0
    %1618 = vmatpush1.msra.mxu0 %v1542
    %1619 = vmatprep.subr.mxu0 0.0
    %1620 = vmatpush1.msra.mxu0 %v1543
    %1621 = vmatprep.subr.mxu0 0.0
    %1622 = vmatpush1.msra.mxu0 %v1544
    %1623 = vmatprep.subr.mxu0 0.0
    %1624 = vmatpush1.msra.mxu0 %v1545
    %1625 = vmatprep.subr.mxu0 0.0
    %1626 = vmatpush1.msra.mxu0 %v1546
    %1627 = vmatprep.subr.mxu0 0.0
    %1628 = vmatpush1.msra.mxu0 %v1547
    %1629 = vmatprep.subr.mxu0 0.0
    %1630 = vmatpush1.msra.mxu0 %v1548
    %1631 = vmatprep.subr.mxu0 0.0
    %1632 = vmatpush1.msra.mxu0 %v1549
    %1633 = vmatprep.subr.mxu0 0.0
    %1634 = vmatpush1.msra.mxu0 %v1550
    %1635 = vmatprep.subr.mxu0 0.0
    %1636 = vmatpush1.msra.mxu0 %v1551
    %1637 = vmatprep.subr.mxu0 0.0
    %1638 = vmatpush1.msra.mxu0 %v1552
    %1639 = vmatprep.subr.mxu0 0.0
    %1640 = vmatpush1.msra.mxu0 %v1553
    %1641 = vmatprep.subr.mxu0 0.0
    %1642 = vmatpush1.msra.mxu0 %v1554
    %1643 = vmatprep.subr.mxu0 0.0
    %1644 = vmatpush1.msra.mxu0 %v1555
    %1645 = vmatprep.subr.mxu0 0.0
    %1646 = vmatpush1.msra.mxu0 %v1556
    %1647 = vmatprep.subr.mxu0 0.0
    %1648 = vmatpush1.msra.mxu0 %v1557
    %1649 = vmatprep.subr.mxu0 0.0
    %1650 = vmatpush1.msra.mxu0 %v1558
    %1651 = vmatprep.subr.mxu0 0.0
    %1652 = vmatpush1.msra.mxu0 %v1559
    %1653 = vmatprep.subr.mxu0 0.0
    %1654 = vmatpush1.msra.mxu0 %v1560
    %1655 = vmatprep.subr.mxu0 0.0
    %1656 = vmatpush1.msra.mxu0 %v1561
    %1657 = vmatprep.subr.mxu0 0.0
    %1658 = vmatpush1.msra.mxu0 %v1562
    %1659 = vmatprep.subr.mxu0 0.0
    %1660 = vmatpush1.msra.mxu0 %v1563
    %1661 = vmatprep.subr.mxu0 0.0
    %1662 = vmatpush1.msra.mxu0 %v1564
    %1663 = vmatprep.subr.mxu0 0.0
    %1664 = vmatpush1.msra.mxu0 %v1565
    %1665 = vmatprep.subr.mxu0 0.0
    %1666 = vmatpush1.msra.mxu0 %v1566
    %1667 = vmatprep.subr.mxu0 0.0
    %1668 = vmatpush1.msra.mxu0 %v1567
    %1669 = vmatprep.subr.mxu0 0.0
    %1670 = vmatpush1.msra.mxu0 %v1568
    %1671 = vmatprep.subr.mxu0 0.0
    %1672 = vmatpush1.msra.mxu0 %v1569
    %1673 = vmatprep.mubr.f32.mxu0 %v1535
    %1674 = vmatmul.mubr.f32.gmra.mrb[0].mxu0 %v1534
    %v1675 = vpop.f32.mrb[0].mxu0
    %v1676 = vadd.f32 %v1607, %v1675
    %v1677 = vpop.f32.mrb[0].mxu0
    %1678 = vdwg.mxu0
    %1679 = vmatprep.subr.mxu0 0.0
    %1680 = vmatpush1.msra.mxu0 %v1570
    %1681 = vmatprep.subr.mxu0 0.0
    %1682 = vmatpush1.msra.mxu0 %v1571
    %1683 = vmatprep.subr.mxu0 0.0
    %1684 = vmatpush1.msra.mxu0 %v1572
    %1685 = vmatprep.subr.mxu0 0.0
    %1686 = vmatpush1.msra.mxu0 %v1573
    %1687 = vmatprep.subr.mxu0 0.0
    %1688 = vmatpush1.msra.mxu0 %v1574
    %1689 = vmatprep.subr.mxu0 0.0
    %1690 = vmatpush1.msra.mxu0 %v1575
    %1691 = vmatprep.subr.mxu0 0.0
    %1692 = vmatpush1.msra.mxu0 %v1576
    %1693 = vmatprep.subr.mxu0 0.0
    %1694 = vmatpush1.msra.mxu0 %v1577
    %1695 = vmatprep.subr.mxu0 0.0
    %1696 = vmatpush1.msra.mxu0 %v1578
    %1697 = vmatprep.subr.mxu0 0.0
    %1698 = vmatpush1.msra.mxu0 %v1579
    %1699 = vmatprep.subr.mxu0 0.0
    %1700 = vmatpush1.msra.mxu0 %v1580
    %1701 = vmatprep.subr.mxu0 0.0
    %1702 = vmatpush1.msra.mxu0 %v1581
    %1703 = vmatprep.subr.mxu0 0.0
    %1704 = vmatpush1.msra.mxu0 %v1582
    %1705 = vmatprep.subr.mxu0 0.0
    %1706 = vmatpush1.msra.mxu0 %v1583
    %1707 = vmatprep.subr.mxu0 0.0
    %1708 = vmatpush1.msra.mxu0 %v1584
    %1709 = vmatprep.subr.mxu0 0.0
    %1710 = vmatpush1.msra.mxu0 %v1585
    %1711 = vmatprep.subr.mxu0 0.0
    %1712 = vmatpush1.msra.mxu0 %v1586
    %1713 = vmatprep.subr.mxu0 0.0
    %1714 = vmatpush1.msra.mxu0 %v1587
    %1715 = vmatprep.subr.mxu0 0.0
    %1716 = vmatpush1.msra.mxu0 %v1588
    %1717 = vmatprep.subr.mxu0 0.0
    %1718 = vmatpush1.msra.mxu0 %v1589
    %1719 = vmatprep.subr.mxu0 0.0
    %1720 = vmatpush1.msra.mxu0 %v1590
    %1721 = vmatprep.subr.mxu0 0.0
    %1722 = vmatpush1.msra.mxu0 %v1591
    %1723 = vmatprep.subr.mxu0 0.0
    %1724 = vmatpush1.msra.mxu0 %v1592
    %1725 = vmatprep.subr.mxu0 0.0
    %1726 = vmatpush1.msra.mxu0 %v1593
    %1727 = vmatprep.subr.mxu0 0.0
    %1728 = vmatpush1.msra.mxu0 %v1594
    %1729 = vmatprep.subr.mxu0 0.0
    %1730 = vmatpush1.msra.mxu0 %v1595
    %1731 = vmatprep.subr.mxu0 0.0
    %1732 = vmatpush1.msra.mxu0 %v1596
    %1733 = vmatprep.subr.mxu0 0.0
    %1734 = vmatpush1.msra.mxu0 %v1597
    %1735 = vmatprep.subr.mxu0 0.0
    %1736 = vmatpush1.msra.mxu0 %v1598
    %1737 = vmatprep.subr.mxu0 0.0
    %1738 = vmatpush1.msra.mxu0 %v1599
    %1739 = vmatprep.subr.mxu0 0.0
    %1740 = vmatpush1.msra.mxu0 %v1600
    %1741 = vmatprep.subr.mxu0 0.0
    %1742 = vmatpush1.msra.mxu0 %v1601
    %1743 = vmatprep.mubr.f32.mxu0 %v1537
    %1744 = vmatmul.mubr.f32.gmra.mrb[0].mxu0 %v1536
    %v1745 = vpop.f32.mrb[0].mxu0
    %v1746 = vadd.f32 %v1676, %v1745
    %v1747 = vpop.f32.mrb[0].mxu0
    %1748 = vdwg.mxu0
    %1749 = vst [vmem:[#allocation10] sm:$0xff] %v1746
    // Predicated region
    $region46: #{tpu_custom_call.1} parent=1 // pred_check
      _
    $region47: #{tpu_custom_call.1} parent=1 // pred_check_branch
      %1751 = sbr.rel (0) target = $region49
    $region48: #{tpu_custom_call.1} parent=1 // pred_region
      %s1753 = ssub.s32 128, 128
      %1754 = vsyncadd [#allocation4], %s1753
      %s1756 = sshll.u32 [#allocation10], 4
      %s1757 = int_to_ptr.vmem [resolvable:$true] %s1756
      %1759 = dma.vmem_to_hbm [thread:$0]  %s1757, 128, %s7, [#allocation4]
    $region49: #{tpu_custom_call.1} parent=1 // pred_fallthru
      _
    // Predicated region
    $region50: #{tpu_custom_call.1} parent=1 // pred_check
      _
    $region51: #{tpu_custom_call.1} parent=1 // pred_check_branch
      %1761 = sbr.rel (0) target = $region53
    $region52: #{tpu_custom_call.1} parent=1 // pred_region
      %1762 = dma.done [#allocation4], 128
    $region53: #{tpu_custom_call.1} parent=1 // pred_fallthru
      _
    %1763 = vsyncpa [#allocation3], 1
    %1764 = vsyncpa [#allocation6], 1
    %1765 = vsyncpa [#allocation9], 1
    %1766 = vsyncpa [#allocation4], 1

</llo_original>
